<compile_context>
chip_gen: v6e
topology: v6e:2x2x1
jax: 0.10.0
libtpu: 0.0.40
codegen_flags: <defaults>
</compile_context>

<pallas_src>
import functools

import jax
import jax.numpy as jnp
import numpy as np
from jax.experimental import pallas as pl
from jax.experimental.pallas import tpu as pltpu

_EPS = 1e-5


# --------------------------------------------------------------------------- #
# Kernels
# --------------------------------------------------------------------------- #
def _banded_conv_rows(x, xpad_ref, b_ref):
    """(3,3) conv on lane-packed rows via 3 banded matmuls.

    x        : [T, H, K]   lane-packed rows (K = W*C_in), f32 value.
    xpad_ref : [T, H+2, K] VMEM scratch; only its 1-row halo is zeroed here.
    b_ref    : [3, K, Nout] banded weights (kw taps + W zero-padding folded in).
    Returns  : [T*H, Nout] f32 accumulator.
    """
    T, H, K = x.shape
    zrow = jnp.zeros((T, 1, K), jnp.float32)
    # Zero only the halo rows (cheap), write the interior once.
    xpad_ref[:, 0:1, :] = zrow
    xpad_ref[:, H + 1:H + 2, :] = zrow
    xpad_ref[:, 1:H + 1, :] = x

    # Leading-dim collapse only (last dim unchanged) -> free relayout.
    x2d = x.reshape(T * H, K)
    acc = jnp.dot(x2d, b_ref[1], preferred_element_type=jnp.float32)        # kh = 1
    acc += jnp.dot(xpad_ref[:, 0:H, :].reshape(T * H, K), b_ref[0],
                   preferred_element_type=jnp.float32)                      # kh = 0 (row above)
    acc += jnp.dot(xpad_ref[:, 2:H + 2, :].reshape(T * H, K), b_ref[2],
                   preferred_element_type=jnp.float32)                      # kh = 2 (row below)
    return acc


def _conv1_kernel(x_ref, b1_ref, y1_ref, st1_ref, xpad_ref):
    # x_ref: [T, H, W*Cin]  b1_ref: [3, W*Cin, W*Cmid]
    # y1_ref: [T, H, W*Cmid]  st1_ref: [1, 2, W*Cmid] per-tile (sum, sum^2)
    T, H, _ = x_ref.shape
    acc = _banded_conv_rows(x_ref[...], xpad_ref, b1_ref)
    y1_ref[...] = acc.reshape(T, H, acc.shape[-1])
    # Single full-block store for the per-tile statistics (one unmasked vst).
    st1_ref[...] = jnp.stack(
        [jnp.sum(acc, axis=0), jnp.sum(acc * acc, axis=0)], axis=0)[None]


def _conv2_kernel(y1_ref, s1_ref, b2_ref, y2_ref, st2_ref, hpad_ref):
    # y1_ref: [T, H, W*Cmid]  s1_ref: [1, W*Cmid]  b2_ref: [3, W*Cmid, W*Cout]
    T, H, C = y1_ref.shape
    # BN1 (precomputed per-channel rsqrt scale, lane-packed) + ReLU, fused here.
    h1 = jnp.maximum(y1_ref[...] * s1_ref[...].reshape(1, 1, C), 0.0)
    acc = _banded_conv_rows(h1, hpad_ref, b2_ref)
    y2_ref[...] = acc.reshape(T, H, acc.shape[-1])
    st2_ref[...] = jnp.stack(
        [jnp.sum(acc, axis=0), jnp.sum(acc * acc, axis=0)], axis=0)[None]


# --------------------------------------------------------------------------- #
# Wrapper helpers
# --------------------------------------------------------------------------- #
def _banded_weights(w, W):
    """conv3d weight [Cout, Cin, 1, 3, 3] -> banded matrices [3, W*Cin, W*Cout].

    B[kh, wi*Cin+ci, wo*Cout+co] = w[co, ci, 0, kh, wi-wo+1] if |wi-wo| <= 1 else 0,
    which folds the kw taps and the width-1 zero padding along W into one matmul.
    """
    Cout, Cin = int(w.shape[0]), int(w.shape[1])
    band = np.zeros((3, W, W), np.float32)          # band[kw, wi, wo]
    for kw in range(3):
        for wo in range(W):
            wi = wo + kw - 1
            if 0 <= wi < W:
                band[kw, wi, wo] = 1.0
    wr = jnp.transpose(w[:, :, 0], (2, 3, 1, 0))    # [kh, kw, Cin, Cout]
    B = jnp.einsum('kio,hkcm->hicom', jnp.asarray(band), wr)   # [3, W, Cin, W, Cout]
    return B.reshape(3, W * Cin, W * Cout).astype(jnp.float32)


def _bn_scale(stats, W, C, count):
    """Per-channel rsqrt(var + eps) from per-tile packed (sum, sum^2)."""
    s = jnp.sum(stats, axis=0).reshape(2, W, C).sum(axis=1)     # [2, C]
    mean = s[0] / count
    var = jnp.maximum(s[1] / count - mean * mean, 0.0)          # correction=0
    return jax.lax.rsqrt(var + _EPS)                            # [C]


def _pick_tile_nd(nd, h, row_budget=1024):
    """Largest divisor of nd keeping ~row_budget image rows per tile (VMEM-safe)."""
    best = 1
    for t in range(1, nd + 1):
        if nd % t == 0 and t * h <= row_budget:
            best = t
    return best


@functools.partial(jax.jit, static_argnames=("tile_nd",))
def double_conv(x, w1, w2, tile_nd=None):
    """x: [N, Cin, D, H, W]; w1: [Cmid, Cin, 1, 3, 3]; w2: [Cout, Cmid, 1, 3, 3]."""
    N, Cin, D, H, W = x.shape
    Cmid, Cout = int(w1.shape[0]), int(w2.shape[0])
    ND = N * D
    if tile_nd is None:
        tile_nd = _pick_tile_nd(ND, H)
    assert ND % tile_nd == 0, (ND, tile_nd)
    grid = (ND // tile_nd,)
    count = ND * H * W                      # elements per channel for BN stats

    # NCDHW -> lane-packed [N*D, H, W*Cin] (channel fastest inside the lane dim).
    xt = jnp.transpose(x, (0, 2, 3, 4, 1)).reshape(ND, H, W * Cin).astype(jnp.float32)

    b1 = _banded_weights(w1, W)             # [3, W*Cin,  W*Cmid]
    b2 = _banded_weights(w2, W)             # [3, W*Cmid, W*Cout]

    cparams = pltpu.CompilerParams(
        dimension_semantics=("parallel",),          # independent tiles -> megacore-shardable
        vmem_limit_bytes=32 * 1024 * 1024)          # safe on v5e/v6e/v7x

    # ---------------- pass 1: conv1 + per-tile BN1 statistics ---------------- #
    flops1 = 2 * ND * H * (W * Cin) * (W * Cmid) * 3
    bytes1 = 4 * (ND * H * W * Cin + 3 * (W * Cin) * (W * Cmid)
                  + ND * H * W * Cmid + grid[0] * 2 * W * Cmid)
    y1, st1 = pl.pallas_call(
        _conv1_kernel,
        out_shape=(jax.ShapeDtypeStruct((ND, H, W * Cmid), jnp.float32),
                   jax.ShapeDtypeStruct((grid[0], 2, W * Cmid), jnp.float32)),
        grid=grid,
        in_specs=[
            pl.BlockSpec((tile_nd, H, W * Cin), lambda i: (i, 0, 0)),
            pl.BlockSpec((3, W * Cin, W * Cmid), lambda i: (0, 0, 0)),
        ],
        out_specs=(
            pl.BlockSpec((tile_nd, H, W * Cmid), lambda i: (i, 0, 0)),
            pl.BlockSpec((1, 2, W * Cmid), lambda i: (i, 0, 0)),
        ),
        scratch_shapes=[pltpu.VMEM((tile_nd, H + 2, W * Cin), jnp.float32)],
        compiler_params=cparams,
        cost_estimate=pl.CostEstimate(flops=flops1, transcendentals=0,
                                      bytes_accessed=bytes1),
    )(xt, b1)

    # Tiny global reduction across tiles/W -> per-channel BN1 scale (lane-packed).
    scale1 = _bn_scale(st1, W, Cmid, count)                      # [Cmid]
    scale1_packed = jnp.tile(scale1, W).reshape(1, W * Cmid)

    # ------------ pass 2: BN1*ReLU fused into conv2 + BN2 statistics --------- #
    flops2 = 2 * ND * H * (W * Cmid) * (W * Cout) * 3
    bytes2 = 4 * (ND * H * W * Cmid + 3 * (W * Cmid) * (W * Cout)
                  + ND * H * W * Cout + grid[0] * 2 * W * Cout + W * Cmid)
    y2, st2 = pl.pallas_call(
        _conv2_kernel,
        out_shape=(jax.ShapeDtypeStruct((ND, H, W * Cout), jnp.float32),
                   jax.ShapeDtypeStruct((grid[0], 2, W * Cout), jnp.float32)),
        grid=grid,
        in_specs=[
            pl.BlockSpec((tile_nd, H, W * Cmid), lambda i: (i, 0, 0)),
            pl.BlockSpec((1, W * Cmid), lambda i: (0, 0)),
            pl.BlockSpec((3, W * Cmid, W * Cout), lambda i: (0, 0, 0)),
        ],
        out_specs=(
            pl.BlockSpec((tile_nd, H, W * Cout), lambda i: (i, 0, 0)),
            pl.BlockSpec((1, 2, W * Cout), lambda i: (i, 0, 0)),
        ),
        scratch_shapes=[pltpu.VMEM((tile_nd, H + 2, W * Cmid), jnp.float32)],
        compiler_params=cparams,
        cost_estimate=pl.CostEstimate(flops=flops2, transcendentals=0,
                                      bytes_accessed=bytes2),
    )(y1, scale1_packed, b2)

    # BN2 scale + final ReLU (last_ReLU=True) fused by XLA into the un-packing
    # transpose -> single HBM pass, output already in the consumer's NCDHW layout.
    scale2 = _bn_scale(st2, W, Cout, count)                      # [Cout]
    out = jnp.maximum(y2.reshape(N, D, H, W, Cout) * scale2, 0.0)
    return jnp.transpose(out, (0, 4, 1, 2, 3))                   # [N, Cout, D, H, W]


# --------------------------------------------------------------------------- #
# Pure-JAX reference (training-mode BFBatchNorm3d, bias-free convs)
# --------------------------------------------------------------------------- #
def _reference(x, w1, w2):
    N, Cin, D, H, W = x.shape
    x2 = x.transpose(0, 2, 1, 3, 4).reshape(N * D, Cin, H, W)

    def conv(inp, w):
        return jax.lax.conv_general_dilated(
            inp, w[:, :, 0], (1, 1), [(1, 1), (1, 1)],
            dimension_numbers=("NCHW", "OIHW", "NCHW"))

    def bn(y):
        var = jnp.var(y, axis=(0, 2, 3), keepdims=True)
        return y / jnp.sqrt(var + _EPS)

    y = jax.nn.relu(bn(conv(x2, w1)))
    y = jax.nn.relu(bn(conv(y, w2)))
    Cout = w2.shape[0]
    return y.reshape(N, D, Cout, H, W).transpose(0, 2, 1, 3, 4)


if __name__ == "__main__":
    # Small shapes: batch=2, in_channels=4, depth=4, spatial=16, mid=out=8.
    N, Cin, D, H, W = 2, 4, 4, 16, 16
    Cmid, Cout = 8, 8

    key = jax.random.PRNGKey(0)
    kx, k1, k2 = jax.random.split(key, 3)
    x = jax.random.normal(kx, (N, Cin, D, H, W), dtype=jnp.float32)
    w1 = jax.random.uniform(k1, (Cmid, Cin, 1, 3, 3), jnp.float32,
                            minval=-1.0, maxval=1.0) / np.sqrt(Cin * 9)
    w2 = jax.random.uniform(k2, (Cout, Cmid, 1, 3, 3), jnp.float32,
                            minval=-1.0, maxval=1.0) / np.sqrt(Cmid * 9)

    # tile_nd=4 -> grid=(2,) so the BlockSpec pipeline / parallel axis is exercised.
    out = jax.block_until_ready(double_conv(x, w1, w2, tile_nd=4))
    ref = jax.block_until_ready(_reference(x, w1, w2))

    assert out.shape == (N, Cout, D, H, W), out.shape
    np.testing.assert_allclose(np.asarray(out), np.asarray(ref),
                               rtol=2e-4, atol=2e-4)
    print("KERNEL_OK")
</pallas_src>

<mosaic_0001>
module attributes {stable_mosaic.version = 11 : i64} {
  func.func @_conv1_kernel(%arg0: i32, %arg1: memref<4x16x64xf32, #tpu.memory_space<vmem>>, %arg2: memref<3x64x128xf32, #tpu.memory_space<vmem>>, %arg3: memref<4x16x128xf32, #tpu.memory_space<vmem>>, %arg4: memref<1x2x128xf32, #tpu.memory_space<vmem>>, %arg5: memref<4x18x64xf32, #tpu.memory_space<vmem>>) attributes {dimension_semantics = [#tpu.dimension_semantics<parallel>], iteration_bounds = array<i64: 2>, scalar_prefetch = 0 : i64, scratch_operands = 1 : i64, tpu.core_type = #tpu.core_type<tc>, window_params = [{transform_indices = @transform_0, window_bounds = array<i64: 4, 16, 64>}, {pipeline_mode = #tpu.pipeline_mode<synchronous>, transform_indices = @transform_1, window_bounds = array<i64: 3, 64, 128>}, {transform_indices = @transform_2, window_bounds = array<i64: 4, 16, 128>}, {transform_indices = @transform_3, window_bounds = array<i64: 1, 2, 128>}]} {
    %c0 = arith.constant 0 : index
    %c0_0 = arith.constant 0 : index
    %c0_1 = arith.constant 0 : index
    %0 = vector.load %arg1[%c0, %c0_0, %c0_1] : memref<4x16x64xf32, #tpu.memory_space<vmem>>, vector<4x16x64xf32>
    %cst = arith.constant 0.000000e+00 : f32
    %1 = vector.broadcast %cst : f32 to vector<4x1x64xf32>
    %c0_2 = arith.constant 0 : index
    %c0_3 = arith.constant 0 : index
    %c0_4 = arith.constant 0 : index
    %2 = vector.load %arg5[%c0_2, %c0_3, %c0_4] : memref<4x18x64xf32, #tpu.memory_space<vmem>>, vector<4x1x64xf32>
    tpu.vector_store %arg5[%c0_2, %c0_3, %c0_4], %1 {strides = array<i32>} : memref<4x18x64xf32, #tpu.memory_space<vmem>>, vector<4x1x64xf32>,
    %c0_5 = arith.constant 0 : index
    %c17 = arith.constant 17 : index
    %c0_6 = arith.constant 0 : index
    %3 = vector.load %arg5[%c0_5, %c17, %c0_6] : memref<4x18x64xf32, #tpu.memory_space<vmem>>, vector<4x1x64xf32>
    tpu.vector_store %arg5[%c0_5, %c17, %c0_6], %1 {strides = array<i32>} : memref<4x18x64xf32, #tpu.memory_space<vmem>>, vector<4x1x64xf32>,
    %c0_7 = arith.constant 0 : index
    %c1 = arith.constant 1 : index
    %c0_8 = arith.constant 0 : index
    %4 = vector.load %arg5[%c0_7, %c1, %c0_8] : memref<4x18x64xf32, #tpu.memory_space<vmem>>, vector<4x16x64xf32>
    tpu.vector_store %arg5[%c0_7, %c1, %c0_8], %0 {strides = array<i32>} : memref<4x18x64xf32, #tpu.memory_space<vmem>>, vector<4x16x64xf32>,
    %5 = vector.shape_cast %0 : vector<4x16x64xf32> to vector<64x64xf32>
    %c1_9 = arith.constant 1 : index
    %c0_10 = arith.constant 0 : index
    %c0_11 = arith.constant 0 : index
    %6 = vector.load %arg2[%c1_9, %c0_10, %c0_11] : memref<3x64x128xf32, #tpu.memory_space<vmem>>, vector<1x64x128xf32>
    %7 = vector.shape_cast %6 : vector<1x64x128xf32> to vector<64x128xf32>
    %cst_12 = arith.constant dense<0.000000e+00> : vector<64x128xf32>
    %8 = tpu.matmul %5, %7, %cst_12 {dimension_numbers = #tpu.dot_dimension_numbers<[1], [0], [0], [1], [0, 0, 1, 1], [], []>} : vector<64x64xf32>, vector<64x128xf32>, vector<64x128xf32> -> vector<64x128xf32>
    %c0_13 = arith.constant 0 : index
    %c0_14 = arith.constant 0 : index
    %c0_15 = arith.constant 0 : index
    %9 = vector.load %arg5[%c0_13, %c0_14, %c0_15] : memref<4x18x64xf32, #tpu.memory_space<vmem>>, vector<4x16x64xf32>
    %10 = vector.shape_cast %9 : vector<4x16x64xf32> to vector<64x64xf32>
    %c0_16 = arith.constant 0 : index
    %c0_17 = arith.constant 0 : index
    %c0_18 = arith.constant 0 : index
    %11 = vector.load %arg2[%c0_16, %c0_17, %c0_18] : memref<3x64x128xf32, #tpu.memory_space<vmem>>, vector<1x64x128xf32>
    %12 = vector.shape_cast %11 : vector<1x64x128xf32> to vector<64x128xf32>
    %cst_19 = arith.constant dense<0.000000e+00> : vector<64x128xf32>
    %13 = tpu.matmul %10, %12, %cst_19 {dimension_numbers = #tpu.dot_dimension_numbers<[1], [0], [0], [1], [0, 0, 1, 1], [], []>} : vector<64x64xf32>, vector<64x128xf32>, vector<64x128xf32> -> vector<64x128xf32>
    %14 = arith.addf %8, %13 : vector<64x128xf32>
    %c0_20 = arith.constant 0 : index
    %c2 = arith.constant 2 : index
    %c0_21 = arith.constant 0 : index
    %15 = vector.load %arg5[%c0_20, %c2, %c0_21] : memref<4x18x64xf32, #tpu.memory_space<vmem>>, vector<4x16x64xf32>
    %16 = vector.shape_cast %15 : vector<4x16x64xf32> to vector<64x64xf32>
    %c2_22 = arith.constant 2 : index
    %c0_23 = arith.constant 0 : index
    %c0_24 = arith.constant 0 : index
    %17 = vector.load %arg2[%c2_22, %c0_23, %c0_24] : memref<3x64x128xf32, #tpu.memory_space<vmem>>, vector<1x64x128xf32>
    %18 = vector.shape_cast %17 : vector<1x64x128xf32> to vector<64x128xf32>
    %cst_25 = arith.constant dense<0.000000e+00> : vector<64x128xf32>
    %19 = tpu.matmul %16, %18, %cst_25 {dimension_numbers = #tpu.dot_dimension_numbers<[1], [0], [0], [1], [0, 0, 1, 1], [], []>} : vector<64x64xf32>, vector<64x128xf32>, vector<64x128xf32> -> vector<64x128xf32>
    %20 = arith.addf %14, %19 : vector<64x128xf32>
    %21 = vector.shape_cast %20 : vector<64x128xf32> to vector<4x16x128xf32>
    %c0_26 = arith.constant 0 : index
    %c0_27 = arith.constant 0 : index
    %c0_28 = arith.constant 0 : index
    %22 = vector.load %arg3[%c0_26, %c0_27, %c0_28] : memref<4x16x128xf32, #tpu.memory_space<vmem>>, vector<4x16x128xf32>
    tpu.vector_store %arg3[%c0_26, %c0_27, %c0_28], %21 {strides = array<i32>} : memref<4x16x128xf32, #tpu.memory_space<vmem>>, vector<4x16x128xf32>,
    %cst_29 = arith.constant dense<0.000000e+00> : vector<128xf32>
    %23 = vector.multi_reduction <add>, %20, %cst_29 [0] : vector<64x128xf32> to vector<128xf32>
    %24 = arith.mulf %20, %20 : vector<64x128xf32>
    %cst_30 = arith.constant dense<0.000000e+00> : vector<128xf32>
    %25 = vector.multi_reduction <add>, %24, %cst_30 [0] : vector<64x128xf32> to vector<128xf32>
    %26 = vector.shape_cast %23 : vector<128xf32> to vector<1x128xf32>
    %27 = vector.shape_cast %25 : vector<128xf32> to vector<1x128xf32>
    %28 = tpu.concatenate %26, %27 in 0 : vector<1x128xf32>, vector<1x128xf32> -> vector<2x128xf32>
    %29 = vector.shape_cast %28 : vector<2x128xf32> to vector<1x2x128xf32>
    %c0_31 = arith.constant 0 : index
    %c0_32 = arith.constant 0 : index
    %c0_33 = arith.constant 0 : index
    %30 = vector.load %arg4[%c0_31, %c0_32, %c0_33] : memref<1x2x128xf32, #tpu.memory_space<vmem>>, vector<1x2x128xf32>
    tpu.vector_store %arg4[%c0_31, %c0_32, %c0_33], %29 {strides = array<i32>} : memref<1x2x128xf32, #tpu.memory_space<vmem>>, vector<1x2x128xf32>,
    return
  }
  func.func @transform_0(%arg0: i32) -> (i32, i32, i32) {
    %c0_i32 = arith.constant 0 : i32
    %c0_i32_0 = arith.constant 0 : i32
    %c0_i32_1 = arith.constant 0 : i32
    return %arg0, %c0_i32, %c0_i32_0 : i32, i32, i32
  }
  func.func @transform_1(%arg0: i32) -> (i32, i32, i32) {
    %c0_i32 = arith.constant 0 : i32
    %c0_i32_0 = arith.constant 0 : i32
    %c0_i32_1 = arith.constant 0 : i32
    %c0_i32_2 = arith.constant 0 : i32
    return %c0_i32, %c0_i32_0, %c0_i32_1 : i32, i32, i32
  }
  func.func @transform_2(%arg0: i32) -> (i32, i32, i32) {
    %c0_i32 = arith.constant 0 : i32
    %c0_i32_0 = arith.constant 0 : i32
    %c0_i32_1 = arith.constant 0 : i32
    return %arg0, %c0_i32, %c0_i32_0 : i32, i32, i32
  }
  func.func @transform_3(%arg0: i32) -> (i32, i32, i32) {
    %c0_i32 = arith.constant 0 : i32
    %c0_i32_0 = arith.constant 0 : i32
    %c0_i32_1 = arith.constant 0 : i32
    return %arg0, %c0_i32, %c0_i32_0 : i32, i32, i32
  }
}

module attributes {stable_mosaic.version = 11 : i64} {
  func.func @_conv2_kernel(%arg0: i32, %arg1: memref<4x16x128xf32, #tpu.memory_space<vmem>>, %arg2: memref<1x128xf32, #tpu.memory_space<vmem>>, %arg3: memref<3x128x128xf32, #tpu.memory_space<vmem>>, %arg4: memref<4x16x128xf32, #tpu.memory_space<vmem>>, %arg5: memref<1x2x128xf32, #tpu.memory_space<vmem>>, %arg6: memref<4x18x128xf32, #tpu.memory_space<vmem>>) attributes {dimension_semantics = [#tpu.dimension_semantics<parallel>], iteration_bounds = array<i64: 2>, scalar_prefetch = 0 : i64, scratch_operands = 1 : i64, tpu.core_type = #tpu.core_type<tc>, window_params = [{transform_indices = @transform_0, window_bounds = array<i64: 4, 16, 128>}, {pipeline_mode = #tpu.pipeline_mode<synchronous>, transform_indices = @transform_1, window_bounds = array<i64: 1, 128>}, {pipeline_mode = #tpu.pipeline_mode<synchronous>, transform_indices = @transform_2, window_bounds = array<i64: 3, 128, 128>}, {transform_indices = @transform_3, window_bounds = array<i64: 4, 16, 128>}, {transform_indices = @transform_4, window_bounds = array<i64: 1, 2, 128>}]} {
    %c0 = arith.constant 0 : index
    %c0_0 = arith.constant 0 : index
    %c0_1 = arith.constant 0 : index
    %0 = vector.load %arg1[%c0, %c0_0, %c0_1] : memref<4x16x128xf32, #tpu.memory_space<vmem>>, vector<4x16x128xf32>
    %c0_2 = arith.constant 0 : index
    %c0_3 = arith.constant 0 : index
    %1 = vector.load %arg2[%c0_2, %c0_3] : memref<1x128xf32, #tpu.memory_space<vmem>>, vector<1x128xf32>
    %2 = vector.shape_cast %1 : vector<1x128xf32> to vector<1x1x128xf32>
    %3 = vector.broadcast %2 : vector<1x1x128xf32> to vector<4x16x128xf32>
    %4 = arith.mulf %0, %3 : vector<4x16x128xf32>
    %cst = arith.constant 0.000000e+00 : f32
    %5 = vector.broadcast %cst : f32 to vector<4x16x128xf32>
    %6 = arith.maximumf %4, %5 : vector<4x16x128xf32>
    %cst_4 = arith.constant 0.000000e+00 : f32
    %7 = vector.broadcast %cst_4 : f32 to vector<4x1x128xf32>
    %c0_5 = arith.constant 0 : index
    %c0_6 = arith.constant 0 : index
    %c0_7 = arith.constant 0 : index
    %8 = vector.load %arg6[%c0_5, %c0_6, %c0_7] : memref<4x18x128xf32, #tpu.memory_space<vmem>>, vector<4x1x128xf32>
    tpu.vector_store %arg6[%c0_5, %c0_6, %c0_7], %7 {strides = array<i32>} : memref<4x18x128xf32, #tpu.memory_space<vmem>>, vector<4x1x128xf32>,
    %c0_8 = arith.constant 0 : index
    %c17 = arith.constant 17 : index
    %c0_9 = arith.constant 0 : index
    %9 = vector.load %arg6[%c0_8, %c17, %c0_9] : memref<4x18x128xf32, #tpu.memory_space<vmem>>, vector<4x1x128xf32>
    tpu.vector_store %arg6[%c0_8, %c17, %c0_9], %7 {strides = array<i32>} : memref<4x18x128xf32, #tpu.memory_space<vmem>>, vector<4x1x128xf32>,
    %c0_10 = arith.constant 0 : index
    %c1 = arith.constant 1 : index
    %c0_11 = arith.constant 0 : index
    %10 = vector.load %arg6[%c0_10, %c1, %c0_11] : memref<4x18x128xf32, #tpu.memory_space<vmem>>, vector<4x16x128xf32>
    tpu.vector_store %arg6[%c0_10, %c1, %c0_11], %6 {strides = array<i32>} : memref<4x18x128xf32, #tpu.memory_space<vmem>>, vector<4x16x128xf32>,
    %11 = vector.shape_cast %6 : vector<4x16x128xf32> to vector<64x128xf32>
    %c1_12 = arith.constant 1 : index
    %c0_13 = arith.constant 0 : index
    %c0_14 = arith.constant 0 : index
    %12 = vector.load %arg3[%c1_12, %c0_13, %c0_14] : memref<3x128x128xf32, #tpu.memory_space<vmem>>, vector<1x128x128xf32>
    %13 = vector.shape_cast %12 : vector<1x128x128xf32> to vector<128x128xf32>
    %cst_15 = arith.constant dense<0.000000e+00> : vector<64x128xf32>
    %14 = tpu.matmul %11, %13, %cst_15 {dimension_numbers = #tpu.dot_dimension_numbers<[1], [0], [0], [1], [0, 0, 1, 1], [], []>} : vector<64x128xf32>, vector<128x128xf32>, vector<64x128xf32> -> vector<64x128xf32>
    %c0_16 = arith.constant 0 : index
    %c0_17 = arith.constant 0 : index
    %c0_18 = arith.constant 0 : index
    %15 = vector.load %arg6[%c0_16, %c0_17, %c0_18] : memref<4x18x128xf32, #tpu.memory_space<vmem>>, vector<4x16x128xf32>
    %16 = vector.shape_cast %15 : vector<4x16x128xf32> to vector<64x128xf32>
    %c0_19 = arith.constant 0 : index
    %c0_20 = arith.constant 0 : index
    %c0_21 = arith.constant 0 : index
    %17 = vector.load %arg3[%c0_19, %c0_20, %c0_21] : memref<3x128x128xf32, #tpu.memory_space<vmem>>, vector<1x128x128xf32>
    %18 = vector.shape_cast %17 : vector<1x128x128xf32> to vector<128x128xf32>
    %cst_22 = arith.constant dense<0.000000e+00> : vector<64x128xf32>
    %19 = tpu.matmul %16, %18, %cst_22 {dimension_numbers = #tpu.dot_dimension_numbers<[1], [0], [0], [1], [0, 0, 1, 1], [], []>} : vector<64x128xf32>, vector<128x128xf32>, vector<64x128xf32> -> vector<64x128xf32>
    %20 = arith.addf %14, %19 : vector<64x128xf32>
    %c0_23 = arith.constant 0 : index
    %c2 = arith.constant 2 : index
    %c0_24 = arith.constant 0 : index
    %21 = vector.load %arg6[%c0_23, %c2, %c0_24] : memref<4x18x128xf32, #tpu.memory_space<vmem>>, vector<4x16x128xf32>
    %22 = vector.shape_cast %21 : vector<4x16x128xf32> to vector<64x128xf32>
    %c2_25 = arith.constant 2 : index
    %c0_26 = arith.constant 0 : index
    %c0_27 = arith.constant 0 : index
    %23 = vector.load %arg3[%c2_25, %c0_26, %c0_27] : memref<3x128x128xf32, #tpu.memory_space<vmem>>, vector<1x128x128xf32>
    %24 = vector.shape_cast %23 : vector<1x128x128xf32> to vector<128x128xf32>
    %cst_28 = arith.constant dense<0.000000e+00> : vector<64x128xf32>
    %25 = tpu.matmul %22, %24, %cst_28 {dimension_numbers = #tpu.dot_dimension_numbers<[1], [0], [0], [1], [0, 0, 1, 1], [], []>} : vector<64x128xf32>, vector<128x128xf32>, vector<64x128xf32> -> vector<64x128xf32>
    %26 = arith.addf %20, %25 : vector<64x128xf32>
    %27 = vector.shape_cast %26 : vector<64x128xf32> to vector<4x16x128xf32>
    %c0_29 = arith.constant 0 : index
    %c0_30 = arith.constant 0 : index
    %c0_31 = arith.constant 0 : index
    %28 = vector.load %arg4[%c0_29, %c0_30, %c0_31] : memref<4x16x128xf32, #tpu.memory_space<vmem>>, vector<4x16x128xf32>
    tpu.vector_store %arg4[%c0_29, %c0_30, %c0_31], %27 {strides = array<i32>} : memref<4x16x128xf32, #tpu.memory_space<vmem>>, vector<4x16x128xf32>,
    %cst_32 = arith.constant dense<0.000000e+00> : vector<128xf32>
    %29 = vector.multi_reduction <add>, %26, %cst_32 [0] : vector<64x128xf32> to vector<128xf32>
    %30 = arith.mulf %26, %26 : vector<64x128xf32>
    %cst_33 = arith.constant dense<0.000000e+00> : vector<128xf32>
    %31 = vector.multi_reduction <add>, %30, %cst_33 [0] : vector<64x128xf32> to vector<128xf32>
    %32 = vector.shape_cast %29 : vector<128xf32> to vector<1x128xf32>
    %33 = vector.shape_cast %31 : vector<128xf32> to vector<1x128xf32>
    %34 = tpu.concatenate %32, %33 in 0 : vector<1x128xf32>, vector<1x128xf32> -> vector<2x128xf32>
    %35 = vector.shape_cast %34 : vector<2x128xf32> to vector<1x2x128xf32>
    %c0_34 = arith.constant 0 : index
    %c0_35 = arith.constant 0 : index
    %c0_36 = arith.constant 0 : index
    %36 = vector.load %arg5[%c0_34, %c0_35, %c0_36] : memref<1x2x128xf32, #tpu.memory_space<vmem>>, vector<1x2x128xf32>
    tpu.vector_store %arg5[%c0_34, %c0_35, %c0_36], %35 {strides = array<i32>} : memref<1x2x128xf32, #tpu.memory_space<vmem>>, vector<1x2x128xf32>,
    return
  }
  func.func @transform_0(%arg0: i32) -> (i32, i32, i32) {
    %c0_i32 = arith.constant 0 : i32
    %c0_i32_0 = arith.constant 0 : i32
    %c0_i32_1 = arith.constant 0 : i32
    return %arg0, %c0_i32, %c0_i32_0 : i32, i32, i32
  }
  func.func @transform_1(%arg0: i32) -> (i32, i32) {
    %c0_i32 = arith.constant 0 : i32
    %c0_i32_0 = arith.constant 0 : i32
    %c0_i32_1 = arith.constant 0 : i32
    return %c0_i32, %c0_i32_0 : i32, i32
  }
  func.func @transform_2(%arg0: i32) -> (i32, i32, i32) {
    %c0_i32 = arith.constant 0 : i32
    %c0_i32_0 = arith.constant 0 : i32
    %c0_i32_1 = arith.constant 0 : i32
    %c0_i32_2 = arith.constant 0 : i32
    return %c0_i32, %c0_i32_0, %c0_i32_1 : i32, i32, i32
  }
  func.func @transform_3(%arg0: i32) -> (i32, i32, i32) {
    %c0_i32 = arith.constant 0 : i32
    %c0_i32_0 = arith.constant 0 : i32
    %c0_i32_1 = arith.constant 0 : i32
    return %arg0, %c0_i32, %c0_i32_0 : i32, i32, i32
  }
  func.func @transform_4(%arg0: i32) -> (i32, i32, i32) {
    %c0_i32 = arith.constant 0 : i32
    %c0_i32_0 = arith.constant 0 : i32
    %c0_i32_1 = arith.constant 0 : i32
    return %arg0, %c0_i32, %c0_i32_0 : i32, i32, i32
  }
}

</mosaic_0001>

<llo_original>
// kernel: tile.8
$region0: #{tile.8}
  #allocation0 [shape = 's32[1]{0}', space=sflag, size = 0x4, scoped, tag = 'scoped memory for tile.8']
  %s0 = inlined_call_operand.vmem [shape: f32[8], index: 0, kind: input, shape index: {}]
  %s1 = inlined_call_operand.vmem [shape: f32[16,8], index: 1, kind: output, shape index: {}]
  // Predicated region
  $region2: #{tile.8} parent=0 // pred_check
    _
  $region3: #{tile.8} parent=0 // pred_check_branch
    %3 = sbr.rel (0) target = $region5
  $region4: #{tile.8} parent=0 // pred_region
    _
  $region5: #{tile.8} parent=0 // pred_fallthru
    _
  %v4 = vld [vmem:[%s0] ss:$0 sm:$0xff]
  %5 = vst [vmem:[%s1] sm:$0xff] %v4
  %s6 = scalar_lea.vmem %s1, 8
  %7 = vst [vmem:[%s6] sm:$0xff] %v4

// kernel: tile.9
$region0: #{tile.9}
  %s0 = inlined_call_operand.vmem [shape: f32[16,8], index: 0, kind: input, shape index: {}]
  %s1 = inlined_call_operand.vmem [shape: f32[1,128], index: 1, kind: output, shape index: {}]
  $region1: #{tile.9} parent=0
    #allocation0 [shape = 'u8[4096]{0}', space=vmem, size = 0x1000, scoped, tag = 'scoped mem for output reshape']
    %v2 = vld [vmem:[%s0] sm:$0x1]
    %vm3 = vcmask 64512
    %4 = vst.msk [vmem:[#allocation0] sm:$0x1] %vm3, %v2
    %s5 = scalar_lea.vmem %s0, 15
    %v6 = vld [vmem:[%s5] sm:$0x1]
    %7 = vrot.lane.b32.xlu0 %v6, 120
    %v8 = vpop.permute.xlu0 %7
    %vm9 = vcmask 1048512
    %10 = vst.msk [vmem:[#allocation0] sm:$0x1] %vm9, %v8
    %s11 = scalar_lea.vmem %s0, 14
    %v12 = vld [vmem:[%s11] sm:$0x1]
    %13 = vrot.lane.b32.xlu0 %v12, 112
    %v14 = vpop.permute.xlu0 %13
    %vm15 = vcmask 982912
    %16 = vst.msk [vmem:[#allocation0] sm:$0x1] %vm15, %v14
    %s17 = scalar_lea.vmem %s0, 13
    %v18 = vld [vmem:[%s17] sm:$0x1]
    %19 = vrot.lane.b32.xlu0 %v18, 104
    %v20 = vpop.permute.xlu0 %19
    %vm21 = vcmask 917312
    %22 = vst.msk [vmem:[#allocation0] sm:$0x1] %vm21, %v20
    %s23 = scalar_lea.vmem %s0, 12
    %v24 = vld [vmem:[%s23] sm:$0x1]
    %25 = vrot.lane.b32.xlu0 %v24, 96
    %v26 = vpop.permute.xlu0 %25
    %vm27 = vcmask 851712
    %28 = vst.msk [vmem:[#allocation0] sm:$0x1] %vm27, %v26
    %s29 = scalar_lea.vmem %s0, 11
    %v30 = vld [vmem:[%s29] sm:$0x1]
    %31 = vrot.lane.b32.xlu0 %v30, 88
    %v32 = vpop.permute.xlu0 %31
    %vm33 = vcmask 786112
    %34 = vst.msk [vmem:[#allocation0] sm:$0x1] %vm33, %v32
    %s35 = scalar_lea.vmem %s0, 10
    %v36 = vld [vmem:[%s35] sm:$0x1]
    %37 = vrot.lane.b32.xlu0 %v36, 80
    %v38 = vpop.permute.xlu0 %37
    %vm39 = vcmask 720512
    %40 = vst.msk [vmem:[#allocation0] sm:$0x1] %vm39, %v38
    %s41 = scalar_lea.vmem %s0, 9
    %v42 = vld [vmem:[%s41] sm:$0x1]
    %43 = vrot.lane.b32.xlu0 %v42, 72
    %v44 = vpop.permute.xlu0 %43
    %vm45 = vcmask 654912
    %46 = vst.msk [vmem:[#allocation0] sm:$0x1] %vm45, %v44
    %s47 = scalar_lea.vmem %s0, 8
    %v48 = vld [vmem:[%s47] sm:$0x1]
    %49 = vrot.lane.b32.xlu0 %v48, 64
    %v50 = vpop.permute.xlu0 %49
    %vm51 = vcmask 589312
    %52 = vst.msk [vmem:[#allocation0] sm:$0x1] %vm51, %v50
    %s53 = scalar_lea.vmem %s0, 7
    %v54 = vld [vmem:[%s53] sm:$0x1]
    %55 = vrot.lane.b32.xlu0 %v54, 56
    %v56 = vpop.permute.xlu0 %55
    %vm57 = vcmask 523712
    %58 = vst.msk [vmem:[#allocation0] sm:$0x1] %vm57, %v56
    %s59 = scalar_lea.vmem %s0, 6
    %v60 = vld [vmem:[%s59] sm:$0x1]
    %61 = vrot.lane.b32.xlu0 %v60, 48
    %v62 = vpop.permute.xlu0 %61
    %vm63 = vcmask 458112
    %64 = vst.msk [vmem:[#allocation0] sm:$0x1] %vm63, %v62
    %s65 = scalar_lea.vmem %s0, 5
    %v66 = vld [vmem:[%s65] sm:$0x1]
    %67 = vrot.lane.b32.xlu0 %v66, 40
    %v68 = vpop.permute.xlu0 %67
    %vm69 = vcmask 392512
    %70 = vst.msk [vmem:[#allocation0] sm:$0x1] %vm69, %v68
    %s71 = scalar_lea.vmem %s0, 4
    %v72 = vld [vmem:[%s71] sm:$0x1]
    %73 = vrot.lane.b32.xlu0 %v72, 32
    %v74 = vpop.permute.xlu0 %73
    %vm75 = vcmask 326912
    %76 = vst.msk [vmem:[#allocation0] sm:$0x1] %vm75, %v74
    %s77 = scalar_lea.vmem %s0, 3
    %v78 = vld [vmem:[%s77] sm:$0x1]
    %79 = vrot.lane.b32.xlu0 %v78, 24
    %v80 = vpop.permute.xlu0 %79
    %vm81 = vcmask 261312
    %82 = vst.msk [vmem:[#allocation0] sm:$0x1] %vm81, %v80
    %s83 = scalar_lea.vmem %s0, 2
    %v84 = vld [vmem:[%s83] sm:$0x1]
    %85 = vrot.lane.b32.xlu0 %v84, 16
    %v86 = vpop.permute.xlu0 %85
    %vm87 = vcmask 195712
    %88 = vst.msk [vmem:[#allocation0] sm:$0x1] %vm87, %v86
    %s89 = scalar_lea.vmem %s0, 1
    %v90 = vld [vmem:[%s89] sm:$0x1]
    %91 = vrot.lane.b32.xlu0 %v90, 8
    %v92 = vpop.permute.xlu0 %91
    %vm93 = vcmask 130112
    %94 = vst.msk [vmem:[#allocation0] sm:$0x1] %vm93, %v92
    %s96 = sshll.u32 1, 1
    %s97 = ssub.s32 %s96, 1
    %v99 = vld [vmem:[#allocation0] sm:%s97]
    %s100 = sshll.u32 1, 1
    %s101 = ssub.s32 %s100, 1
    %102 = vst [vmem:[%s1] sm:%s101] %v99

// kernel: double_conv.2
$region0: #{double_conv.2}
  #allocation0 [shape = 'u32[]', space=smem, size = 0x4, offset = 0x4, fixed_abs, tag = 'smem constant byte address 0x4 - core index']
  #allocation1 [shape = 'u32[144,128]{1,0:T(1,128)}', space=vmem, size = 0x12000, scoped, tag = 'internal scratch']
  #allocation2 [shape = 'f32[4,18,64]{2,1,0:T(8,128)}', space=vmem, size = 0xc000, scoped, tag = 'scratch operand']
  %s0 = inlined_call_operand.vmem [shape: f32[8,16,64], index: 0, kind: input, shape index: {}]
  %s1 = inlined_call_operand.vmem [shape: f32[3,64,128], index: 1, kind: input, shape index: {}]
  %s2 = inlined_call_operand.vmem [shape: f32[8,16,128], index: 2, kind: output, shape index: {0}]
  %s3 = inlined_call_operand.vmem [shape: f32[2,2,128], index: 3, kind: output, shape index: {1}]
  %4 = xla_tuple %s2, %s3
  %s5 = sld [smem:[#allocation0]]
  $region49: #{double_conv.2} parent=0
    _
  %s7 = ssub.s32 1, %s5
  %s8 = scalar_select 0, %s7, %s5
  loop: start=0, step=1, limit=4
  $region2: #{double_conv.2} parent=0 // loop_pre_header
    _
  $region3: #{double_conv.2} parent=0 // loop_header
    %s10 = sphi 0, %s14
    %p11 = scmp.ge.s32.totalorder %s10, 4
    %s20 = sphi 0, %s22
    %s23 = sphi 0, %s20
    %s24 = sphi 0, %s23
    %s40 = sphi 0, %s24
    %s44 = sphi 0, %s44
    %s46 = sphi 0, %s44
    %s47 = sphi 0, %s46
    %s61 = sphi 0, %s47
    %s67 = sphi 0, %s69
    %s70 = sphi 0, %s67
    %s71 = sphi 0, %s70
    %s87 = sphi 0, %s71
    %s93 = sphi 0, %s95
    %s96 = sphi 0, %s93
    %s97 = sphi 0, %s96
    %s113 = sphi 0, %s97
  $region4: #{double_conv.2} parent=0 // loop_header_branch
    %13 = sbr.rel (%p11) target = $region8
  $region5: #{double_conv.2} parent=0 // loop_body
    %s15 = ssub.s32 %s10, 1
    %s16 = ssub.s32 %s10, 2
    %s17 = sadd.s32 %s10, 1
    %s18 = ssub.s32 %s10, %s17
    %p19 = scmp.eq.s32.totalorder %s18, 0
    %s21 = sadd.s32 %s20, 1
    %s22 = scalar_select %p19, %s20, %s21
    %p25 = pneg %p19
    %p26 = scmp.eq.s32.totalorder %s10, 1
    %p27 = por %p25, %p26
    %p28 = scmp.ne.s32.totalorder %s20, %s23
    %p29 = scmp.eq.s32.totalorder %s10, 0
    %p30 = por %p28, %p29
    %p31 = scmp.ne.s32.totalorder %s20, %s23
    %p32 = scmp.eq.s32.totalorder %s15, 1
    %p33 = por %p31, %p32
    %p34 = scmp.ne.s32.totalorder %s23, %s24
    %p35 = scmp.eq.s32.totalorder %s15, 0
    %p36 = por %p34, %p35
    %p37 = scmp.ne.s32.totalorder %s23, %s24
    %p38 = scmp.eq.s32.totalorder %s16, 1
    %p39 = por %p37, %p38
    %p41 = scmp.ne.s32.totalorder %s24, %s40
    %p42 = scmp.eq.s32.totalorder %s16, 0
    %p43 = por %p41, %p42
    %s45 = sadd.s32 %s44, 1
    %p48 = scmp.eq.s32.totalorder %s10, 1
    %p49 = scmp.ne.s32.totalorder %s44, %s46
    %p50 = scmp.eq.s32.totalorder %s10, 0
    %p51 = por %p49, %p50
    %p52 = scmp.ne.s32.totalorder %s44, %s46
    %p53 = scmp.eq.s32.totalorder %s15, 1
    %p54 = por %p52, %p53
    %p55 = scmp.ne.s32.totalorder %s46, %s47
    %p56 = scmp.eq.s32.totalorder %s15, 0
    %p57 = por %p55, %p56
    %p58 = scmp.ne.s32.totalorder %s46, %s47
    %p59 = scmp.eq.s32.totalorder %s16, 1
    %p60 = por %p58, %p59
    %p62 = scmp.ne.s32.totalorder %s47, %s61
    %p63 = scmp.eq.s32.totalorder %s16, 0
    %p64 = por %p62, %p63
    %s65 = ssub.s32 %s10, %s17
    %p66 = scmp.eq.s32.totalorder %s65, 0
    %s68 = sadd.s32 %s67, 1
    %s69 = scalar_select %p66, %s67, %s68
    %p72 = pneg %p66
    %p73 = scmp.eq.s32.totalorder %s10, 1
    %p74 = por %p72, %p73
    %p75 = scmp.ne.s32.totalorder %s67, %s70
    %p76 = scmp.eq.s32.totalorder %s10, 0
    %p77 = por %p75, %p76
    %p78 = scmp.ne.s32.totalorder %s67, %s70
    %p79 = scmp.eq.s32.totalorder %s15, 1
    %p80 = por %p78, %p79
    %p81 = scmp.ne.s32.totalorder %s70, %s71
    %p82 = scmp.eq.s32.totalorder %s15, 0
    %p83 = por %p81, %p82
    %p84 = scmp.ne.s32.totalorder %s70, %s71
    %p85 = scmp.eq.s32.totalorder %s16, 1
    %p86 = por %p84, %p85
    %p88 = scmp.ne.s32.totalorder %s71, %s87
    %p89 = scmp.eq.s32.totalorder %s16, 0
    %p90 = por %p88, %p89
    %s91 = ssub.s32 %s10, %s17
    %p92 = scmp.eq.s32.totalorder %s91, 0
    %s94 = sadd.s32 %s93, 1
    %s95 = scalar_select %p92, %s93, %s94
    %p98 = pneg %p92
    %p99 = scmp.eq.s32.totalorder %s10, 1
    %p100 = por %p98, %p99
    %p101 = scmp.ne.s32.totalorder %s93, %s96
    %p102 = scmp.eq.s32.totalorder %s10, 0
    %p103 = por %p101, %p102
    %p104 = scmp.ne.s32.totalorder %s93, %s96
    %p105 = scmp.eq.s32.totalorder %s15, 1
    %p106 = por %p104, %p105
    %p107 = scmp.ne.s32.totalorder %s96, %s97
    %p108 = scmp.eq.s32.totalorder %s15, 0
    %p109 = por %p107, %p108
    %p110 = scmp.ne.s32.totalorder %s96, %s97
    %p111 = scmp.eq.s32.totalorder %s16, 1
    %p112 = por %p110, %p111
    %p114 = scmp.ne.s32.totalorder %s97, %s113
    %p115 = scmp.eq.s32.totalorder %s16, 0
    %p116 = por %p114, %p115
    %p117 = scmp.le.s32.totalorder 1, %s10
    %p118 = scmp.lt.s32.totalorder %s10, 3
    %p119 = pnand %p117, %p118
    %p120 = pneg %p119
    // Predicated region
    $region9: #{double_conv.2} parent=5 // pred_check
      _
    $region10: #{double_conv.2} parent=5 // pred_check_branch
      %122 = sbr.rel (%p119) target = $region12
    $region11: #{double_conv.2} parent=5 // pred_region
      %s123 = ssub.s32 %s10, 1
      // Predicated region
      $region13: #{double_conv.2} parent=11 // pred_check
        %p124 = pneg %p57
      $region14: #{double_conv.2} parent=11 // pred_check_branch
        %126 = sbr.rel (%p124) target = $region16
      $region15: #{double_conv.2} parent=11 // pred_region
        _
      $region16: #{double_conv.2} parent=11 // pred_fallthru
        _
    $region12: #{double_conv.2} parent=5 // pred_fallthru
      _
    %p127 = scmp.lt.s32.totalorder %s10, 2
    // Predicated region
    $region17: #{double_conv.2} parent=5 // pred_check
      %p128 = pneg %p127
    $region18: #{double_conv.2} parent=5 // pred_check_branch
      %130 = sbr.rel (%p128) target = $region20
    $region19: #{double_conv.2} parent=5 // pred_region
      // Predicated region
      $region21: #{double_conv.2} parent=19 // pred_check
        %p131 = pneg %p30
      $region22: #{double_conv.2} parent=19 // pred_check_branch
        %133 = sbr.rel (%p131) target = $region24
      $region23: #{double_conv.2} parent=19 // pred_region
        %s134 = smul.u32 4, %s10
        %p135 = scmp.lt.s32.totalorder %s134, 7
        %s136 = scalar_select %p135, %s134, 7
        %s137 = smul.addr %s136, 2
        %s138 = smul.addr %s137, 8
        %s139 = scalar_lea.vmem %s0, %s138
        %s140 = smul.u32 4, %s10
      $region24: #{double_conv.2} parent=19 // pred_fallthru
        _
    $region20: #{double_conv.2} parent=5 // pred_fallthru
      _
    %p141 = scmp.le.s32.totalorder 1, %s10
    %p142 = scmp.lt.s32.totalorder %s10, 3
    %p143 = pnand %p141, %p142
    %p144 = pneg %p143
    // Predicated region
    $region25: #{double_conv.2} parent=5 // pred_check
      _
    $region26: #{double_conv.2} parent=5 // pred_check_branch
      %146 = sbr.rel (%p143) target = $region28
    $region27: #{double_conv.2} parent=5 // pred_region
      %s147 = ssub.s32 %s10, 1
      %s148 = smul.u32 4, %s15
      %p149 = scmp.lt.s32.totalorder %s148, 7
      %s150 = scalar_select %p149, %s148, 7
      %s151 = smul.addr %s150, 2
      %s152 = smul.addr %s151, 8
      %s153 = scalar_lea.vmem %s0, %s152
      %p154 = pneg %p36
      %p155 = pneg %p33
      %p156 = pneg %p57
      %p157 = pneg %p54
      %p158 = pneg %p83
      %p159 = pneg %p80
      %s160 = smul.u32 4, %s15
      %p161 = scmp.lt.s32.totalorder %s160, 7
      %s162 = scalar_select %p161, %s160, 7
      %s163 = smul.addr %s162, 2
      %s164 = smul.addr %s163, 8
      %s165 = scalar_lea.vmem %s2, %s164
      %p166 = pneg %p109
      %p167 = pneg %p106
      %p168 = scmp.lt.s32.totalorder %s15, 1
      %s169 = scalar_select %p168, %s15, 1
      %s170 = smul.addr %s169, 2
      %s171 = scalar_lea.vmem %s3, %s170
      %s172 = smul.u32 4, %s15
      %p173 = scmp.lt.s32.totalorder %s172, 7
      %s174 = scalar_select %p173, %s172, 7
      %s175 = smul.addr %s174, 2
      %s176 = smul.addr %s175, 8
      %s177 = scalar_lea.vmem %s0, %s176
      %s178 = smul.u32 4, %s15
      %s179 = smul.u32 4, %s15
      %p180 = scmp.lt.s32.totalorder %s179, 7
      %s181 = scalar_select %p180, %s179, 7
      %s182 = smul.addr %s181, 2
      %s183 = smul.addr %s182, 8
      %s184 = scalar_lea.vmem %s2, %s183
      %s185 = smul.u32 4, %s15
      %p186 = scmp.lt.s32.totalorder %s15, 1
      %s187 = scalar_select %p186, %s15, 1
      %s188 = smul.addr %s187, 2
      %s189 = scalar_lea.vmem %s3, %s188
      %v190 = vld [vmem:[%s177] sm:$0xff]
      %v191 = vld [vmem:[%s177 + $0x8] sm:$0xff]
      %v192 = vld [vmem:[%s177 + $0x10] sm:$0xff]
      %v193 = vld [vmem:[%s177 + $0x18] sm:$0xff]
      %v194 = vld [vmem:[%s177 + $0x20] sm:$0xff]
      %v195 = vld [vmem:[%s177 + $0x28] sm:$0xff]
      %v196 = vld [vmem:[%s177 + $0x30] sm:$0xff]
      %v197 = vld [vmem:[%s177 + $0x38] sm:$0xff]
      %vm198 = vcmask 516096
      %199 = vst.msk [vmem:[#allocation2] sm:$0x1] %vm198, 0.0
      %200 = vst.msk [vmem:[#allocation2 + $0x18] sm:$0x1] %vm198, 0.0
      %201 = vst.msk [vmem:[#allocation2 + $0x30] sm:$0x1] %vm198, 0.0
      %202 = vst.msk [vmem:[#allocation2 + $0x48] sm:$0x1] %vm198, 0.0
      %203 = vst.msk [vmem:[#allocation2 + $0x11] sm:$0x1] %vm198, 0.0
      %204 = vst.msk [vmem:[#allocation2 + $0x29] sm:$0x1] %vm198, 0.0
      %205 = vst.msk [vmem:[#allocation2 + $0x41] sm:$0x1] %vm198, 0.0
      %206 = vst.msk [vmem:[#allocation2 + $0x59] sm:$0x1] %vm198, 0.0
      %vm207 = vcmask 523264
      %208 = vst.msk [vmem:[#allocation2 + $0x1] sm:$0xff] %vm207, %v190
      %209 = vst.msk [vmem:[#allocation2 + $0x9] sm:$0xff] %vm207, %v191
      %210 = vst.msk [vmem:[#allocation2 + $0x19] sm:$0xff] %vm207, %v192
      %211 = vst.msk [vmem:[#allocation2 + $0x21] sm:$0xff] %vm207, %v193
      %212 = vst.msk [vmem:[#allocation2 + $0x31] sm:$0xff] %vm207, %v194
      %213 = vst.msk [vmem:[#allocation2 + $0x39] sm:$0xff] %vm207, %v195
      %214 = vst.msk [vmem:[#allocation2 + $0x49] sm:$0xff] %vm207, %v196
      %215 = vst.msk [vmem:[#allocation2 + $0x51] sm:$0xff] %vm207, %v197
      %s216 = scalar_lea.vmem %s1, 64
      %v217 = vld [vmem:[%s216] sm:$0xff]
      %v218 = vld [vmem:[%s216 + $0x8] sm:$0xff]
      %v219 = vld [vmem:[%s216 + $0x10] sm:$0xff]
      %v220 = vld [vmem:[%s216 + $0x18] sm:$0xff]
      %v221 = vld [vmem:[%s216 + $0x20] sm:$0xff]
      %v222 = vld [vmem:[%s216 + $0x28] sm:$0xff]
      %v223 = vld [vmem:[%s216 + $0x30] sm:$0xff]
      %v224 = vld [vmem:[%s216 + $0x38] sm:$0xff]
      %v225 = vld [vmem:[#allocation2] sm:$0xff]
      %v226 = vld [vmem:[#allocation2 + $0x8] sm:$0xff]
      %v227 = vld [vmem:[#allocation2 + $0x18] sm:$0xff]
      %v228 = vld [vmem:[#allocation2 + $0x20] sm:$0xff]
      %v229 = vld [vmem:[#allocation2 + $0x30] sm:$0xff]
      %v230 = vld [vmem:[#allocation2 + $0x38] sm:$0xff]
      %v231 = vld [vmem:[#allocation2 + $0x48] sm:$0xff]
      %v232 = vld [vmem:[#allocation2 + $0x50] sm:$0xff]
      %v233 = vld [vmem:[%s1] sm:$0xff]
      %v234 = vld [vmem:[%s1 + $0x8] sm:$0xff]
      %v235 = vld [vmem:[%s1 + $0x10] sm:$0xff]
      %v236 = vld [vmem:[%s1 + $0x18] sm:$0xff]
      %v237 = vld [vmem:[%s1 + $0x20] sm:$0xff]
      %v238 = vld [vmem:[%s1 + $0x28] sm:$0xff]
      %v239 = vld [vmem:[%s1 + $0x30] sm:$0xff]
      %v240 = vld [vmem:[%s1 + $0x38] sm:$0xff]
      %v242 = vsel %vm207, %v225, 0
      %v245 = vsel %vm207, %v226, 0
      %v248 = vsel %vm207, %v227, 0
      %v251 = vsel %vm207, %v228, 0
      %v254 = vsel %vm207, %v229, 0
      %v257 = vsel %vm207, %v230, 0
      %v260 = vsel %vm207, %v231, 0
      %v263 = vsel %vm207, %v232, 0
      %265 = vmatprep.subr.mxu0 0.0
      %266 = vmatpush1.msra.mxu0 0.0
      %267 = vmatprep.subr.mxu0 0.0
      %268 = vmatpush1.msra.mxu0 0.0
      %269 = vmatprep.subr.mxu0 0.0
      %270 = vmatpush1.msra.mxu0 0.0
      %271 = vmatprep.subr.mxu0 0.0
      %272 = vmatpush1.msra.mxu0 0.0
      %273 = vmatprep.subr.mxu0 0.0
      %274 = vmatpush1.msra.mxu0 0.0
      %275 = vmatprep.subr.mxu0 0.0
      %276 = vmatpush1.msra.mxu0 0.0
      %277 = vmatprep.subr.mxu0 0.0
      %278 = vmatpush1.msra.mxu0 0.0
      %279 = vmatprep.subr.mxu0 0.0
      %280 = vmatpush1.msra.mxu0 0.0
      %281 = vmatprep.subr.mxu0 0.0
      %282 = vmatpush1.msra.mxu0 %v240
      %283 = vmatprep.subr.mxu0 0.0
      %284 = vmatpush1.msra.mxu0 %v239
      %285 = vmatprep.subr.mxu0 0.0
      %286 = vmatpush1.msra.mxu0 %v238
      %287 = vmatprep.subr.mxu0 0.0
      %288 = vmatpush1.msra.mxu0 %v237
      %289 = vmatprep.subr.mxu0 0.0
      %290 = vmatpush1.msra.mxu0 %v236
      %291 = vmatprep.subr.mxu0 0.0
      %292 = vmatpush1.msra.mxu0 %v235
      %293 = vmatprep.subr.mxu0 0.0
      %294 = vmatpush1.msra.mxu0 %v234
      %295 = vmatprep.subr.mxu0 0.0
      %296 = vmatpush1.msra.mxu0 %v233
      %297 = vmatprep.subr.mxu0 0.0
      %298 = vmatpush2.msra.mxu0 0.0
      %299 = vmatprep.subr.mxu0 0.0
      %300 = vmatpush2.msra.mxu0 0.0
      %301 = vmatprep.subr.mxu0 0.0
      %302 = vmatpush2.msra.mxu0 0.0
      %303 = vmatprep.subr.mxu0 0.0
      %304 = vmatpush2.msra.mxu0 0.0
      %305 = vmatprep.subr.mxu0 0.0
      %306 = vmatpush2.msra.mxu0 0.0
      %307 = vmatprep.subr.mxu0 0.0
      %308 = vmatpush2.msra.mxu0 0.0
      %309 = vmatprep.subr.mxu0 0.0
      %310 = vmatpush2.msra.mxu0 0.0
      %311 = vmatprep.subr.mxu0 0.0
      %312 = vmatpush2.msra.mxu0 0.0
      %313 = vmatprep.subr.mxu0 0.0
      %314 = vmatpush2.msra.mxu0 0.0
      %315 = vmatprep.subr.mxu0 0.0
      %316 = vmatpush2.msra.mxu0 0.0
      %317 = vmatprep.subr.mxu0 0.0
      %318 = vmatpush2.msra.mxu0 0.0
      %319 = vmatprep.subr.mxu0 0.0
      %320 = vmatpush2.msra.mxu0 0.0
      %321 = vmatprep.subr.mxu0 0.0
      %322 = vmatpush2.msra.mxu0 0.0
      %323 = vmatprep.subr.mxu0 0.0
      %324 = vmatpush2.msra.mxu0 0.0
      %325 = vmatprep.subr.mxu0 0.0
      %326 = vmatpush2.msra.mxu0 0.0
      %327 = vmatprep.subr.mxu0 0.0
      %328 = vmatpush2.msra.mxu0 0.0
      %329 = vmatprep.mubr.f32.mxu0 0.0
      %330 = vmatmul.mubr.f32.gmra.mxu0 %v242
      %v331 = vpop.f32.mrf.mxu0
      %v332 = vadd.f32 0.0, %v331
      %v333 = vpop.f32.mrf.mxu0
      %334 = vmatprep.mubr.f32.mxu0 0.0
      %335 = vmatmul.mubr.f32.gmra.mxu0 %v245
      %v336 = vpop.f32.mrf.mxu0
      %v337 = vadd.f32 0.0, %v336
      %v338 = vpop.f32.mrf.mxu0
      %339 = vmatprep.mubr.f32.mxu0 0.0
      %340 = vmatmul.mubr.f32.gmra.mxu0 %v248
      %v341 = vpop.f32.mrf.mxu0
      %v342 = vadd.f32 0.0, %v341
      %v343 = vpop.f32.mrf.mxu0
      %344 = vmatprep.mubr.f32.mxu0 0.0
      %345 = vmatmul.mubr.f32.gmra.mxu0 %v251
      %v346 = vpop.f32.mrf.mxu0
      %v347 = vadd.f32 0.0, %v346
      %v348 = vpop.f32.mrf.mxu0
      %349 = vmatprep.mubr.f32.mxu0 0.0
      %350 = vmatmul.mubr.f32.gmra.mxu0 %v254
      %v351 = vpop.f32.mrf.mxu0
      %v352 = vadd.f32 0.0, %v351
      %v353 = vpop.f32.mrf.mxu0
      %354 = vmatprep.mubr.f32.mxu0 0.0
      %355 = vmatmul.mubr.f32.gmra.mxu0 %v257
      %v356 = vpop.f32.mrf.mxu0
      %v357 = vadd.f32 0.0, %v356
      %v358 = vpop.f32.mrf.mxu0
      %359 = vmatprep.mubr.f32.mxu0 0.0
      %360 = vmatmul.mubr.f32.gmra.mxu0 %v260
      %v361 = vpop.f32.mrf.mxu0
      %v362 = vadd.f32 0.0, %v361
      %v363 = vpop.f32.mrf.mxu0
      %364 = vmatprep.mubr.f32.mxu0 0.0
      %365 = vmatmul.mubr.f32.gmra.mxu0 %v263
      %v366 = vpop.f32.mrf.mxu0
      %v367 = vadd.f32 0.0, %v366
      %v368 = vpop.f32.mrf.mxu0
      %369 = vdwg.mxu0
      %v371 = vsel %vm207, %v190, 0
      %v374 = vsel %vm207, %v191, 0
      %v377 = vsel %vm207, %v192, 0
      %v380 = vsel %vm207, %v193, 0
      %v383 = vsel %vm207, %v194, 0
      %v386 = vsel %vm207, %v195, 0
      %v389 = vsel %vm207, %v196, 0
      %v392 = vsel %vm207, %v197, 0
      %394 = vmatprep.subr.mxu0 0.0
      %395 = vmatpush1.msra.mxu0 0.0
      %396 = vmatprep.subr.mxu0 0.0
      %397 = vmatpush1.msra.mxu0 0.0
      %398 = vmatprep.subr.mxu0 0.0
      %399 = vmatpush1.msra.mxu0 0.0
      %400 = vmatprep.subr.mxu0 0.0
      %401 = vmatpush1.msra.mxu0 0.0
      %402 = vmatprep.subr.mxu0 0.0
      %403 = vmatpush1.msra.mxu0 0.0
      %404 = vmatprep.subr.mxu0 0.0
      %405 = vmatpush1.msra.mxu0 0.0
      %406 = vmatprep.subr.mxu0 0.0
      %407 = vmatpush1.msra.mxu0 0.0
      %408 = vmatprep.subr.mxu0 0.0
      %409 = vmatpush1.msra.mxu0 0.0
      %410 = vmatprep.subr.mxu0 0.0
      %411 = vmatpush1.msra.mxu0 %v224
      %412 = vmatprep.subr.mxu0 0.0
      %413 = vmatpush1.msra.mxu0 %v223
      %414 = vmatprep.subr.mxu0 0.0
      %415 = vmatpush1.msra.mxu0 %v222
      %416 = vmatprep.subr.mxu0 0.0
      %417 = vmatpush1.msra.mxu0 %v221
      %418 = vmatprep.subr.mxu0 0.0
      %419 = vmatpush1.msra.mxu0 %v220
      %420 = vmatprep.subr.mxu0 0.0
      %421 = vmatpush1.msra.mxu0 %v219
      %422 = vmatprep.subr.mxu0 0.0
      %423 = vmatpush1.msra.mxu0 %v218
      %424 = vmatprep.subr.mxu0 0.0
      %425 = vmatpush1.msra.mxu0 %v217
      %426 = vmatprep.subr.mxu0 0.0
      %427 = vmatpush2.msra.mxu0 0.0
      %428 = vmatprep.subr.mxu0 0.0
      %429 = vmatpush2.msra.mxu0 0.0
      %430 = vmatprep.subr.mxu0 0.0
      %431 = vmatpush2.msra.mxu0 0.0
      %432 = vmatprep.subr.mxu0 0.0
      %433 = vmatpush2.msra.mxu0 0.0
      %434 = vmatprep.subr.mxu0 0.0
      %435 = vmatpush2.msra.mxu0 0.0
      %436 = vmatprep.subr.mxu0 0.0
      %437 = vmatpush2.msra.mxu0 0.0
      %438 = vmatprep.subr.mxu0 0.0
      %439 = vmatpush2.msra.mxu0 0.0
      %440 = vmatprep.subr.mxu0 0.0
      %441 = vmatpush2.msra.mxu0 0.0
      %442 = vmatprep.subr.mxu0 0.0
      %443 = vmatpush2.msra.mxu0 0.0
      %444 = vmatprep.subr.mxu0 0.0
      %445 = vmatpush2.msra.mxu0 0.0
      %446 = vmatprep.subr.mxu0 0.0
      %447 = vmatpush2.msra.mxu0 0.0
      %448 = vmatprep.subr.mxu0 0.0
      %449 = vmatpush2.msra.mxu0 0.0
      %450 = vmatprep.subr.mxu0 0.0
      %451 = vmatpush2.msra.mxu0 0.0
      %452 = vmatprep.subr.mxu0 0.0
      %453 = vmatpush2.msra.mxu0 0.0
      %454 = vmatprep.subr.mxu0 0.0
      %455 = vmatpush2.msra.mxu0 0.0
      %456 = vmatprep.subr.mxu0 0.0
      %457 = vmatpush2.msra.mxu0 0.0
      %458 = vmatprep.mubr.f32.mxu0 0.0
      %459 = vmatmul.mubr.f32.gmra.mxu0 %v371
      %v460 = vpop.f32.mrf.mxu0
      %v461 = vadd.f32 %v332, %v460
      %v462 = vpop.f32.mrf.mxu0
      %463 = vmatprep.mubr.f32.mxu0 0.0
      %464 = vmatmul.mubr.f32.gmra.mxu0 %v374
      %v465 = vpop.f32.mrf.mxu0
      %v466 = vadd.f32 %v337, %v465
      %v467 = vpop.f32.mrf.mxu0
      %468 = vmatprep.mubr.f32.mxu0 0.0
      %469 = vmatmul.mubr.f32.gmra.mxu0 %v377
      %v470 = vpop.f32.mrf.mxu0
      %v471 = vadd.f32 %v342, %v470
      %v472 = vpop.f32.mrf.mxu0
      %473 = vmatprep.mubr.f32.mxu0 0.0
      %474 = vmatmul.mubr.f32.gmra.mxu0 %v380
      %v475 = vpop.f32.mrf.mxu0
      %v476 = vadd.f32 %v347, %v475
      %v477 = vpop.f32.mrf.mxu0
      %478 = vmatprep.mubr.f32.mxu0 0.0
      %479 = vmatmul.mubr.f32.gmra.mxu0 %v383
      %v480 = vpop.f32.mrf.mxu0
      %v481 = vadd.f32 %v352, %v480
      %v482 = vpop.f32.mrf.mxu0
      %483 = vmatprep.mubr.f32.mxu0 0.0
      %484 = vmatmul.mubr.f32.gmra.mxu0 %v386
      %v485 = vpop.f32.mrf.mxu0
      %v486 = vadd.f32 %v357, %v485
      %v487 = vpop.f32.mrf.mxu0
      %488 = vmatprep.mubr.f32.mxu0 0.0
      %489 = vmatmul.mubr.f32.gmra.mxu0 %v389
      %v490 = vpop.f32.mrf.mxu0
      %v491 = vadd.f32 %v362, %v490
      %v492 = vpop.f32.mrf.mxu0
      %493 = vmatprep.mubr.f32.mxu0 0.0
      %494 = vmatmul.mubr.f32.gmra.mxu0 %v392
      %v495 = vpop.f32.mrf.mxu0
      %v496 = vadd.f32 %v367, %v495
      %v497 = vpop.f32.mrf.mxu0
      %498 = vdwg.mxu0
      %v499 = vld [vmem:[#allocation2 + $0x2] sm:$0xff]
      %v500 = vld [vmem:[#allocation2 + $0xa] sm:$0xff]
      %v501 = vld [vmem:[#allocation2 + $0x1a] sm:$0xff]
      %v502 = vld [vmem:[#allocation2 + $0x22] sm:$0xff]
      %v503 = vld [vmem:[#allocation2 + $0x32] sm:$0xff]
      %v504 = vld [vmem:[#allocation2 + $0x3a] sm:$0xff]
      %v505 = vld [vmem:[#allocation2 + $0x4a] sm:$0xff]
      %v506 = vld [vmem:[#allocation2 + $0x52] sm:$0xff]
      %s507 = scalar_lea.vmem %s1, 128
      %v508 = vld [vmem:[%s507] sm:$0xff]
      %v509 = vld [vmem:[%s507 + $0x8] sm:$0xff]
      %v510 = vld [vmem:[%s507 + $0x10] sm:$0xff]
      %v511 = vld [vmem:[%s507 + $0x18] sm:$0xff]
      %v512 = vld [vmem:[%s507 + $0x20] sm:$0xff]
      %v513 = vld [vmem:[%s507 + $0x28] sm:$0xff]
      %v514 = vld [vmem:[%s507 + $0x30] sm:$0xff]
      %v515 = vld [vmem:[%s507 + $0x38] sm:$0xff]
      %v517 = vsel %vm207, %v499, 0
      %v520 = vsel %vm207, %v500, 0
      %v523 = vsel %vm207, %v501, 0
      %v526 = vsel %vm207, %v502, 0
      %v529 = vsel %vm207, %v503, 0
      %v532 = vsel %vm207, %v504, 0
      %v535 = vsel %vm207, %v505, 0
      %v538 = vsel %vm207, %v506, 0
      %540 = vmatprep.subr.mxu0 0.0
      %541 = vmatpush1.msra.mxu0 0.0
      %542 = vmatprep.subr.mxu0 0.0
      %543 = vmatpush1.msra.mxu0 0.0
      %544 = vmatprep.subr.mxu0 0.0
      %545 = vmatpush1.msra.mxu0 0.0
      %546 = vmatprep.subr.mxu0 0.0
      %547 = vmatpush1.msra.mxu0 0.0
      %548 = vmatprep.subr.mxu0 0.0
      %549 = vmatpush1.msra.mxu0 0.0
      %550 = vmatprep.subr.mxu0 0.0
      %551 = vmatpush1.msra.mxu0 0.0
      %552 = vmatprep.subr.mxu0 0.0
      %553 = vmatpush1.msra.mxu0 0.0
      %554 = vmatprep.subr.mxu0 0.0
      %555 = vmatpush1.msra.mxu0 0.0
      %556 = vmatprep.subr.mxu0 0.0
      %557 = vmatpush1.msra.mxu0 %v515
      %558 = vmatprep.subr.mxu0 0.0
      %559 = vmatpush1.msra.mxu0 %v514
      %560 = vmatprep.subr.mxu0 0.0
      %561 = vmatpush1.msra.mxu0 %v513
      %562 = vmatprep.subr.mxu0 0.0
      %563 = vmatpush1.msra.mxu0 %v512
      %564 = vmatprep.subr.mxu0 0.0
      %565 = vmatpush1.msra.mxu0 %v511
      %566 = vmatprep.subr.mxu0 0.0
      %567 = vmatpush1.msra.mxu0 %v510
      %568 = vmatprep.subr.mxu0 0.0
      %569 = vmatpush1.msra.mxu0 %v509
      %570 = vmatprep.subr.mxu0 0.0
      %571 = vmatpush1.msra.mxu0 %v508
      %572 = vmatprep.subr.mxu0 0.0
      %573 = vmatpush2.msra.mxu0 0.0
      %574 = vmatprep.subr.mxu0 0.0
      %575 = vmatpush2.msra.mxu0 0.0
      %576 = vmatprep.subr.mxu0 0.0
      %577 = vmatpush2.msra.mxu0 0.0
      %578 = vmatprep.subr.mxu0 0.0
      %579 = vmatpush2.msra.mxu0 0.0
      %580 = vmatprep.subr.mxu0 0.0
      %581 = vmatpush2.msra.mxu0 0.0
      %582 = vmatprep.subr.mxu0 0.0
      %583 = vmatpush2.msra.mxu0 0.0
      %584 = vmatprep.subr.mxu0 0.0
      %585 = vmatpush2.msra.mxu0 0.0
      %586 = vmatprep.subr.mxu0 0.0
      %587 = vmatpush2.msra.mxu0 0.0
      %588 = vmatprep.subr.mxu0 0.0
      %589 = vmatpush2.msra.mxu0 0.0
      %590 = vmatprep.subr.mxu0 0.0
      %591 = vmatpush2.msra.mxu0 0.0
      %592 = vmatprep.subr.mxu0 0.0
      %593 = vmatpush2.msra.mxu0 0.0
      %594 = vmatprep.subr.mxu0 0.0
      %595 = vmatpush2.msra.mxu0 0.0
      %596 = vmatprep.subr.mxu0 0.0
      %597 = vmatpush2.msra.mxu0 0.0
      %598 = vmatprep.subr.mxu0 0.0
      %599 = vmatpush2.msra.mxu0 0.0
      %600 = vmatprep.subr.mxu0 0.0
      %601 = vmatpush2.msra.mxu0 0.0
      %602 = vmatprep.subr.mxu0 0.0
      %603 = vmatpush2.msra.mxu0 0.0
      %604 = vmatprep.mubr.f32.mxu0 0.0
      %605 = vmatmul.mubr.f32.gmra.mxu0 %v517
      %v606 = vpop.f32.mrf.mxu0
      %v607 = vadd.f32 0.0, %v606
      %v608 = vpop.f32.mrf.mxu0
      %609 = vmatprep.mubr.f32.mxu0 0.0
      %610 = vmatmul.mubr.f32.gmra.mxu0 %v520
      %v611 = vpop.f32.mrf.mxu0
      %v612 = vadd.f32 0.0, %v611
      %v613 = vpop.f32.mrf.mxu0
      %614 = vmatprep.mubr.f32.mxu0 0.0
      %615 = vmatmul.mubr.f32.gmra.mxu0 %v523
      %v616 = vpop.f32.mrf.mxu0
      %v617 = vadd.f32 0.0, %v616
      %v618 = vpop.f32.mrf.mxu0
      %619 = vmatprep.mubr.f32.mxu0 0.0
      %620 = vmatmul.mubr.f32.gmra.mxu0 %v526
      %v621 = vpop.f32.mrf.mxu0
      %v622 = vadd.f32 0.0, %v621
      %v623 = vpop.f32.mrf.mxu0
      %624 = vmatprep.mubr.f32.mxu0 0.0
      %625 = vmatmul.mubr.f32.gmra.mxu0 %v529
      %v626 = vpop.f32.mrf.mxu0
      %v627 = vadd.f32 0.0, %v626
      %v628 = vpop.f32.mrf.mxu0
      %629 = vmatprep.mubr.f32.mxu0 0.0
      %630 = vmatmul.mubr.f32.gmra.mxu0 %v532
      %v631 = vpop.f32.mrf.mxu0
      %v632 = vadd.f32 0.0, %v631
      %v633 = vpop.f32.mrf.mxu0
      %634 = vmatprep.mubr.f32.mxu0 0.0
      %635 = vmatmul.mubr.f32.gmra.mxu0 %v535
      %v636 = vpop.f32.mrf.mxu0
      %v637 = vadd.f32 0.0, %v636
      %v638 = vpop.f32.mrf.mxu0
      %639 = vmatprep.mubr.f32.mxu0 0.0
      %640 = vmatmul.mubr.f32.gmra.mxu0 %v538
      %v641 = vpop.f32.mrf.mxu0
      %v642 = vadd.f32 0.0, %v641
      %v643 = vpop.f32.mrf.mxu0
      %644 = vdwg.mxu0
      %v645 = vadd.f32 %v461, %v607
      %v646 = vadd.f32 %v466, %v612
      %v647 = vadd.f32 %v471, %v617
      %v648 = vadd.f32 %v476, %v622
      %v649 = vadd.f32 %v481, %v627
      %v650 = vadd.f32 %v486, %v632
      %v651 = vadd.f32 %v491, %v637
      %v652 = vadd.f32 %v496, %v642
      %653 = vst [vmem:[%s184] sm:$0xff] %v645
      %654 = vst [vmem:[%s184 + $0x8] sm:$0xff] %v646
      %655 = vst [vmem:[%s184 + $0x10] sm:$0xff] %v647
      %656 = vst [vmem:[%s184 + $0x18] sm:$0xff] %v648
      %657 = vst [vmem:[%s184 + $0x20] sm:$0xff] %v649
      %658 = vst [vmem:[%s184 + $0x28] sm:$0xff] %v650
      %659 = vst [vmem:[%s184 + $0x30] sm:$0xff] %v651
      %660 = vst [vmem:[%s184 + $0x38] sm:$0xff] %v652
      %v661 = vadd.f32 %v645, %v646
      %v662 = vadd.f32 %v661, %v647
      %v663 = vadd.f32 %v662, %v648
      %v664 = vadd.f32 %v663, %v649
      %v665 = vadd.f32 %v664, %v650
      %v666 = vadd.f32 %v665, %v651
      %v667 = vadd.f32 %v666, %v652
      %v668 = vrot.slane %v667, 4
      %v669 = vadd.f32 %v667, %v668
      %v670 = vrot.slane %v669, 2
      %v671 = vadd.f32 %v669, %v670
      %v672 = vrot.slane %v671, 1
      %v673 = vadd.f32 %v671, %v672
      %v674 = vmul.f32 %v645, %v645
      %v675 = vmul.f32 %v646, %v646
      %v676 = vmul.f32 %v647, %v647
      %v677 = vmul.f32 %v648, %v648
      %v678 = vmul.f32 %v649, %v649
      %v679 = vmul.f32 %v650, %v650
      %v680 = vmul.f32 %v651, %v651
      %v681 = vmul.f32 %v652, %v652
      %v682 = vadd.f32 %v674, %v675
      %v683 = vadd.f32 %v682, %v676
      %v684 = vadd.f32 %v683, %v677
      %v685 = vadd.f32 %v684, %v678
      %v686 = vadd.f32 %v685, %v679
      %v687 = vadd.f32 %v686, %v680
      %v688 = vadd.f32 %v687, %v681
      %v689 = vrot.slane %v688, 4
      %v690 = vadd.f32 %v688, %v689
      %v691 = vrot.slane %v690, 2
      %v692 = vadd.f32 %v690, %v691
      %v693 = vrot.slane %v692, 1
      %v694 = vadd.f32 %v692, %v693
      %vm695 = vcmask 1040384
      %v696 = vsel %vm695, %v673, %v694
      %697 = vst [vmem:[%s189] sm:$0x3] %v696
      %s698 = smul.u32 4, %s15
      %p699 = scmp.lt.s32.totalorder %s698, 7
      %s700 = scalar_select %p699, %s698, 7
      %s701 = smul.addr %s700, 2
      %s702 = smul.addr %s701, 8
      %s703 = scalar_lea.vmem %s2, %s702
      %p704 = scmp.lt.s32.totalorder %s15, 1
      %s705 = scalar_select %p704, %s15, 1
      %s706 = smul.addr %s705, 2
      %s707 = scalar_lea.vmem %s3, %s706
      // Predicated region
      $region29: #{double_conv.2} parent=27 // pred_check
        %p708 = pneg %p80
      $region30: #{double_conv.2} parent=27 // pred_check_branch
        %710 = sbr.rel (%p708) target = $region32
      $region31: #{double_conv.2} parent=27 // pred_region
        %s711 = smul.u32 4, %s15
      $region32: #{double_conv.2} parent=27 // pred_fallthru
        _
      // Predicated region
      $region33: #{double_conv.2} parent=27 // pred_check
        %p712 = pneg %p106
      $region34: #{double_conv.2} parent=27 // pred_check_branch
        %714 = sbr.rel (%p712) target = $region36
      $region35: #{double_conv.2} parent=27 // pred_region
        _
      $region36: #{double_conv.2} parent=27 // pred_fallthru
        _
    $region28: #{double_conv.2} parent=5 // pred_fallthru
      _
    %p715 = scmp.le.s32.totalorder 2, %s10
    // Predicated region
    $region37: #{double_conv.2} parent=5 // pred_check
      %p716 = pneg %p715
    $region38: #{double_conv.2} parent=5 // pred_check_branch
      %718 = sbr.rel (%p716) target = $region40
    $region39: #{double_conv.2} parent=5 // pred_region
      %s719 = ssub.s32 %s10, 2
      // Predicated region
      $region41: #{double_conv.2} parent=39 // pred_check
        %p720 = pneg %p86
      $region42: #{double_conv.2} parent=39 // pred_check_branch
        %722 = sbr.rel (%p720) target = $region44
      $region43: #{double_conv.2} parent=39 // pred_region
        %s723 = smul.u32 4, %s16
        %p724 = scmp.lt.s32.totalorder %s723, 7
        %s725 = scalar_select %p724, %s723, 7
        %s726 = smul.addr %s725, 2
        %s727 = smul.addr %s726, 8
        %s728 = scalar_lea.vmem %s2, %s727
      $region44: #{double_conv.2} parent=39 // pred_fallthru
        _
      // Predicated region
      $region45: #{double_conv.2} parent=39 // pred_check
        %p729 = pneg %p112
      $region46: #{double_conv.2} parent=39 // pred_check_branch
        %731 = sbr.rel (%p729) target = $region48
      $region47: #{double_conv.2} parent=39 // pred_region
        %p732 = scmp.lt.s32.totalorder %s16, 1
        %s733 = scalar_select %p732, %s16, 1
        %s734 = smul.addr %s733, 2
        %s735 = scalar_lea.vmem %s3, %s734
      $region48: #{double_conv.2} parent=39 // pred_fallthru
        _
    $region40: #{double_conv.2} parent=5 // pred_fallthru
      _
  $region6: #{double_conv.2} parent=0 // loop_footer
    %s14 = sadd.s32 1, %s10
  $region7: #{double_conv.2} parent=0 // loop_footer_branch
    %9 = sbr.rel target = $region3
  $region8: #{double_conv.2} parent=0 // loop_exit
    _

// kernel: double_conv.3
$region0: #{double_conv.3}
  #allocation0 [shape = 'u32[]', space=smem, size = 0x4, offset = 0x4, fixed_abs, tag = 'smem constant byte address 0x4 - core index']
  #allocation1 [shape = 'u32[144,128]{1,0:T(1,128)}', space=vmem, size = 0x12000, scoped, tag = 'internal scratch']
  #allocation2 [shape = 'f32[4,18,128]{2,1,0:T(8,128)}', space=vmem, size = 0xc000, scoped, tag = 'scratch operand']
  %s0 = inlined_call_operand.vmem [shape: f32[8,16,128], index: 0, kind: input, shape index: {}]
  %s1 = inlined_call_operand.vmem [shape: f32[1,128], index: 1, kind: input, shape index: {}]
  %s2 = inlined_call_operand.vmem [shape: f32[3,128,128], index: 2, kind: input, shape index: {}]
  %s3 = inlined_call_operand.vmem [shape: f32[8,16,128], index: 3, kind: output, shape index: {0}]
  %s4 = inlined_call_operand.vmem [shape: f32[2,2,128], index: 4, kind: output, shape index: {1}]
  %5 = xla_tuple %s3, %s4
  %s6 = sld [smem:[#allocation0]]
  $region53: #{double_conv.3} parent=0
    _
  %s8 = ssub.s32 1, %s6
  %s9 = scalar_select 0, %s8, %s6
  loop: start=0, step=1, limit=4
  $region2: #{double_conv.3} parent=0 // loop_pre_header
    _
  $region3: #{double_conv.3} parent=0 // loop_header
    %s11 = sphi 0, %s15
    %p12 = scmp.ge.s32.totalorder %s11, 4
    %s21 = sphi 0, %s23
    %s24 = sphi 0, %s21
    %s25 = sphi 0, %s24
    %s41 = sphi 0, %s25
    %s45 = sphi 0, %s45
    %s47 = sphi 0, %s45
    %s48 = sphi 0, %s47
    %s62 = sphi 0, %s48
    %s66 = sphi 0, %s66
    %s68 = sphi 0, %s66
    %s69 = sphi 0, %s68
    %s83 = sphi 0, %s69
    %s89 = sphi 0, %s91
    %s92 = sphi 0, %s89
    %s93 = sphi 0, %s92
    %s109 = sphi 0, %s93
    %s115 = sphi 0, %s117
    %s118 = sphi 0, %s115
    %s119 = sphi 0, %s118
    %s135 = sphi 0, %s119
  $region4: #{double_conv.3} parent=0 // loop_header_branch
    %14 = sbr.rel (%p12) target = $region8
  $region5: #{double_conv.3} parent=0 // loop_body
    %s16 = ssub.s32 %s11, 1
    %s17 = ssub.s32 %s11, 2
    %s18 = sadd.s32 %s11, 1
    %s19 = ssub.s32 %s11, %s18
    %p20 = scmp.eq.s32.totalorder %s19, 0
    %s22 = sadd.s32 %s21, 1
    %s23 = scalar_select %p20, %s21, %s22
    %p26 = pneg %p20
    %p27 = scmp.eq.s32.totalorder %s11, 1
    %p28 = por %p26, %p27
    %p29 = scmp.ne.s32.totalorder %s21, %s24
    %p30 = scmp.eq.s32.totalorder %s11, 0
    %p31 = por %p29, %p30
    %p32 = scmp.ne.s32.totalorder %s21, %s24
    %p33 = scmp.eq.s32.totalorder %s16, 1
    %p34 = por %p32, %p33
    %p35 = scmp.ne.s32.totalorder %s24, %s25
    %p36 = scmp.eq.s32.totalorder %s16, 0
    %p37 = por %p35, %p36
    %p38 = scmp.ne.s32.totalorder %s24, %s25
    %p39 = scmp.eq.s32.totalorder %s17, 1
    %p40 = por %p38, %p39
    %p42 = scmp.ne.s32.totalorder %s25, %s41
    %p43 = scmp.eq.s32.totalorder %s17, 0
    %p44 = por %p42, %p43
    %s46 = sadd.s32 %s45, 1
    %p49 = scmp.eq.s32.totalorder %s11, 1
    %p50 = scmp.ne.s32.totalorder %s45, %s47
    %p51 = scmp.eq.s32.totalorder %s11, 0
    %p52 = por %p50, %p51
    %p53 = scmp.ne.s32.totalorder %s45, %s47
    %p54 = scmp.eq.s32.totalorder %s16, 1
    %p55 = por %p53, %p54
    %p56 = scmp.ne.s32.totalorder %s47, %s48
    %p57 = scmp.eq.s32.totalorder %s16, 0
    %p58 = por %p56, %p57
    %p59 = scmp.ne.s32.totalorder %s47, %s48
    %p60 = scmp.eq.s32.totalorder %s17, 1
    %p61 = por %p59, %p60
    %p63 = scmp.ne.s32.totalorder %s48, %s62
    %p64 = scmp.eq.s32.totalorder %s17, 0
    %p65 = por %p63, %p64
    %s67 = sadd.s32 %s66, 1
    %p70 = scmp.eq.s32.totalorder %s11, 1
    %p71 = scmp.ne.s32.totalorder %s66, %s68
    %p72 = scmp.eq.s32.totalorder %s11, 0
    %p73 = por %p71, %p72
    %p74 = scmp.ne.s32.totalorder %s66, %s68
    %p75 = scmp.eq.s32.totalorder %s16, 1
    %p76 = por %p74, %p75
    %p77 = scmp.ne.s32.totalorder %s68, %s69
    %p78 = scmp.eq.s32.totalorder %s16, 0
    %p79 = por %p77, %p78
    %p80 = scmp.ne.s32.totalorder %s68, %s69
    %p81 = scmp.eq.s32.totalorder %s17, 1
    %p82 = por %p80, %p81
    %p84 = scmp.ne.s32.totalorder %s69, %s83
    %p85 = scmp.eq.s32.totalorder %s17, 0
    %p86 = por %p84, %p85
    %s87 = ssub.s32 %s11, %s18
    %p88 = scmp.eq.s32.totalorder %s87, 0
    %s90 = sadd.s32 %s89, 1
    %s91 = scalar_select %p88, %s89, %s90
    %p94 = pneg %p88
    %p95 = scmp.eq.s32.totalorder %s11, 1
    %p96 = por %p94, %p95
    %p97 = scmp.ne.s32.totalorder %s89, %s92
    %p98 = scmp.eq.s32.totalorder %s11, 0
    %p99 = por %p97, %p98
    %p100 = scmp.ne.s32.totalorder %s89, %s92
    %p101 = scmp.eq.s32.totalorder %s16, 1
    %p102 = por %p100, %p101
    %p103 = scmp.ne.s32.totalorder %s92, %s93
    %p104 = scmp.eq.s32.totalorder %s16, 0
    %p105 = por %p103, %p104
    %p106 = scmp.ne.s32.totalorder %s92, %s93
    %p107 = scmp.eq.s32.totalorder %s17, 1
    %p108 = por %p106, %p107
    %p110 = scmp.ne.s32.totalorder %s93, %s109
    %p111 = scmp.eq.s32.totalorder %s17, 0
    %p112 = por %p110, %p111
    %s113 = ssub.s32 %s11, %s18
    %p114 = scmp.eq.s32.totalorder %s113, 0
    %s116 = sadd.s32 %s115, 1
    %s117 = scalar_select %p114, %s115, %s116
    %p120 = pneg %p114
    %p121 = scmp.eq.s32.totalorder %s11, 1
    %p122 = por %p120, %p121
    %p123 = scmp.ne.s32.totalorder %s115, %s118
    %p124 = scmp.eq.s32.totalorder %s11, 0
    %p125 = por %p123, %p124
    %p126 = scmp.ne.s32.totalorder %s115, %s118
    %p127 = scmp.eq.s32.totalorder %s16, 1
    %p128 = por %p126, %p127
    %p129 = scmp.ne.s32.totalorder %s118, %s119
    %p130 = scmp.eq.s32.totalorder %s16, 0
    %p131 = por %p129, %p130
    %p132 = scmp.ne.s32.totalorder %s118, %s119
    %p133 = scmp.eq.s32.totalorder %s17, 1
    %p134 = por %p132, %p133
    %p136 = scmp.ne.s32.totalorder %s119, %s135
    %p137 = scmp.eq.s32.totalorder %s17, 0
    %p138 = por %p136, %p137
    %p139 = scmp.le.s32.totalorder 1, %s11
    %p140 = scmp.lt.s32.totalorder %s11, 3
    %p141 = pnand %p139, %p140
    %p142 = pneg %p141
    // Predicated region
    $region9: #{double_conv.3} parent=5 // pred_check
      _
    $region10: #{double_conv.3} parent=5 // pred_check_branch
      %144 = sbr.rel (%p141) target = $region12
    $region11: #{double_conv.3} parent=5 // pred_region
      %s145 = ssub.s32 %s11, 1
      // Predicated region
      $region13: #{double_conv.3} parent=11 // pred_check
        %p146 = pneg %p58
      $region14: #{double_conv.3} parent=11 // pred_check_branch
        %148 = sbr.rel (%p146) target = $region16
      $region15: #{double_conv.3} parent=11 // pred_region
        _
      $region16: #{double_conv.3} parent=11 // pred_fallthru
        _
      // Predicated region
      $region17: #{double_conv.3} parent=11 // pred_check
        %p149 = pneg %p79
      $region18: #{double_conv.3} parent=11 // pred_check_branch
        %151 = sbr.rel (%p149) target = $region20
      $region19: #{double_conv.3} parent=11 // pred_region
        _
      $region20: #{double_conv.3} parent=11 // pred_fallthru
        _
    $region12: #{double_conv.3} parent=5 // pred_fallthru
      _
    %p152 = scmp.lt.s32.totalorder %s11, 2
    // Predicated region
    $region21: #{double_conv.3} parent=5 // pred_check
      %p153 = pneg %p152
    $region22: #{double_conv.3} parent=5 // pred_check_branch
      %155 = sbr.rel (%p153) target = $region24
    $region23: #{double_conv.3} parent=5 // pred_region
      // Predicated region
      $region25: #{double_conv.3} parent=23 // pred_check
        %p156 = pneg %p31
      $region26: #{double_conv.3} parent=23 // pred_check_branch
        %158 = sbr.rel (%p156) target = $region28
      $region27: #{double_conv.3} parent=23 // pred_region
        %s159 = smul.u32 4, %s11
        %p160 = scmp.lt.s32.totalorder %s159, 7
        %s161 = scalar_select %p160, %s159, 7
        %s162 = smul.addr %s161, 2
        %s163 = smul.addr %s162, 8
        %s164 = scalar_lea.vmem %s0, %s163
        %s165 = smul.u32 4, %s11
      $region28: #{double_conv.3} parent=23 // pred_fallthru
        _
    $region24: #{double_conv.3} parent=5 // pred_fallthru
      _
    %p166 = scmp.le.s32.totalorder 1, %s11
    %p167 = scmp.lt.s32.totalorder %s11, 3
    %p168 = pnand %p166, %p167
    %p169 = pneg %p168
    // Predicated region
    $region29: #{double_conv.3} parent=5 // pred_check
      _
    $region30: #{double_conv.3} parent=5 // pred_check_branch
      %171 = sbr.rel (%p168) target = $region32
    $region31: #{double_conv.3} parent=5 // pred_region
      %s172 = ssub.s32 %s11, 1
      %s173 = smul.u32 4, %s16
      %p174 = scmp.lt.s32.totalorder %s173, 7
      %s175 = scalar_select %p174, %s173, 7
      %s176 = smul.addr %s175, 2
      %s177 = smul.addr %s176, 8
      %s178 = scalar_lea.vmem %s0, %s177
      %p179 = pneg %p37
      %p180 = pneg %p34
      %p181 = pneg %p58
      %p182 = pneg %p55
      %p183 = pneg %p79
      %p184 = pneg %p76
      %p185 = pneg %p105
      %p186 = pneg %p102
      %s187 = smul.u32 4, %s16
      %p188 = scmp.lt.s32.totalorder %s187, 7
      %s189 = scalar_select %p188, %s187, 7
      %s190 = smul.addr %s189, 2
      %s191 = smul.addr %s190, 8
      %s192 = scalar_lea.vmem %s3, %s191
      %p193 = pneg %p131
      %p194 = pneg %p128
      %p195 = scmp.lt.s32.totalorder %s16, 1
      %s196 = scalar_select %p195, %s16, 1
      %s197 = smul.addr %s196, 2
      %s198 = scalar_lea.vmem %s4, %s197
      %s199 = smul.u32 4, %s16
      %p200 = scmp.lt.s32.totalorder %s199, 7
      %s201 = scalar_select %p200, %s199, 7
      %s202 = smul.addr %s201, 2
      %s203 = smul.addr %s202, 8
      %s204 = scalar_lea.vmem %s0, %s203
      %s205 = smul.u32 4, %s16
      %s206 = smul.u32 4, %s16
      %p207 = scmp.lt.s32.totalorder %s206, 7
      %s208 = scalar_select %p207, %s206, 7
      %s209 = smul.addr %s208, 2
      %s210 = smul.addr %s209, 8
      %s211 = scalar_lea.vmem %s3, %s210
      %s212 = smul.u32 4, %s16
      %p213 = scmp.lt.s32.totalorder %s16, 1
      %s214 = scalar_select %p213, %s16, 1
      %s215 = smul.addr %s214, 2
      %s216 = scalar_lea.vmem %s4, %s215
      %v217 = vld [vmem:[%s204] sm:$0xff]
      %v218 = vld [vmem:[%s204 + $0x8] sm:$0xff]
      %v219 = vld [vmem:[%s204 + $0x10] sm:$0xff]
      %v220 = vld [vmem:[%s204 + $0x18] sm:$0xff]
      %v221 = vld [vmem:[%s204 + $0x20] sm:$0xff]
      %v222 = vld [vmem:[%s204 + $0x28] sm:$0xff]
      %v223 = vld [vmem:[%s204 + $0x30] sm:$0xff]
      %v224 = vld [vmem:[%s204 + $0x38] sm:$0xff]
      %v225 = vld [vmem:[%s1] sm:$0x1]
      %v227 = vlaneseq
      %v228 = vshrl.u32 %v227, 7
      %v229 = vsub.s32 0, %v228
      %v230 = vrot.slane %v225, %v229
      %v232 = vmul.f32 %v217, %v230
      %v233 = vmul.f32 %v218, %v230
      %v234 = vmul.f32 %v219, %v230
      %v235 = vmul.f32 %v220, %v230
      %v236 = vmul.f32 %v221, %v230
      %v237 = vmul.f32 %v222, %v230
      %v238 = vmul.f32 %v223, %v230
      %v239 = vmul.f32 %v224, %v230
      %v240 = vmax.f32 %v232, 0.0
      %v241 = vmax.f32 %v233, 0.0
      %v242 = vmax.f32 %v234, 0.0
      %v243 = vmax.f32 %v235, 0.0
      %v244 = vmax.f32 %v236, 0.0
      %v245 = vmax.f32 %v237, 0.0
      %v246 = vmax.f32 %v238, 0.0
      %v247 = vmax.f32 %v239, 0.0
      %248 = vst [vmem:[#allocation2] sm:$0x1] 0.0
      %249 = vst [vmem:[#allocation2 + $0x18] sm:$0x1] 0.0
      %250 = vst [vmem:[#allocation2 + $0x30] sm:$0x1] 0.0
      %251 = vst [vmem:[#allocation2 + $0x48] sm:$0x1] 0.0
      %252 = vst [vmem:[#allocation2 + $0x11] sm:$0x1] 0.0
      %253 = vst [vmem:[#allocation2 + $0x29] sm:$0x1] 0.0
      %254 = vst [vmem:[#allocation2 + $0x41] sm:$0x1] 0.0
      %255 = vst [vmem:[#allocation2 + $0x59] sm:$0x1] 0.0
      %256 = vst [vmem:[#allocation2 + $0x1] sm:$0xff] %v240
      %257 = vst [vmem:[#allocation2 + $0x9] sm:$0xff] %v241
      %258 = vst [vmem:[#allocation2 + $0x19] sm:$0xff] %v242
      %259 = vst [vmem:[#allocation2 + $0x21] sm:$0xff] %v243
      %260 = vst [vmem:[#allocation2 + $0x31] sm:$0xff] %v244
      %261 = vst [vmem:[#allocation2 + $0x39] sm:$0xff] %v245
      %262 = vst [vmem:[#allocation2 + $0x49] sm:$0xff] %v246
      %263 = vst [vmem:[#allocation2 + $0x51] sm:$0xff] %v247
      %s264 = scalar_lea.vmem %s2, 128
      %v265 = vld [vmem:[%s264] sm:$0xff]
      %v266 = vld [vmem:[%s264 + $0x8] sm:$0xff]
      %v267 = vld [vmem:[%s264 + $0x10] sm:$0xff]
      %v268 = vld [vmem:[%s264 + $0x18] sm:$0xff]
      %v269 = vld [vmem:[%s264 + $0x20] sm:$0xff]
      %v270 = vld [vmem:[%s264 + $0x28] sm:$0xff]
      %v271 = vld [vmem:[%s264 + $0x30] sm:$0xff]
      %v272 = vld [vmem:[%s264 + $0x38] sm:$0xff]
      %v273 = vld [vmem:[%s264 + $0x40] sm:$0xff]
      %v274 = vld [vmem:[%s264 + $0x48] sm:$0xff]
      %v275 = vld [vmem:[%s264 + $0x50] sm:$0xff]
      %v276 = vld [vmem:[%s264 + $0x58] sm:$0xff]
      %v277 = vld [vmem:[%s264 + $0x60] sm:$0xff]
      %v278 = vld [vmem:[%s264 + $0x68] sm:$0xff]
      %v279 = vld [vmem:[%s264 + $0x70] sm:$0xff]
      %v280 = vld [vmem:[%s264 + $0x78] sm:$0xff]
      %v281 = vld [vmem:[#allocation2] sm:$0xff]
      %v282 = vld [vmem:[#allocation2 + $0x8] sm:$0xff]
      %v283 = vld [vmem:[#allocation2 + $0x18] sm:$0xff]
      %v284 = vld [vmem:[#allocation2 + $0x20] sm:$0xff]
      %v285 = vld [vmem:[#allocation2 + $0x30] sm:$0xff]
      %v286 = vld [vmem:[#allocation2 + $0x38] sm:$0xff]
      %v287 = vld [vmem:[#allocation2 + $0x48] sm:$0xff]
      %v288 = vld [vmem:[#allocation2 + $0x50] sm:$0xff]
      %v289 = vld [vmem:[%s2] sm:$0xff]
      %v290 = vld [vmem:[%s2 + $0x8] sm:$0xff]
      %v291 = vld [vmem:[%s2 + $0x10] sm:$0xff]
      %v292 = vld [vmem:[%s2 + $0x18] sm:$0xff]
      %v293 = vld [vmem:[%s2 + $0x20] sm:$0xff]
      %v294 = vld [vmem:[%s2 + $0x28] sm:$0xff]
      %v295 = vld [vmem:[%s2 + $0x30] sm:$0xff]
      %v296 = vld [vmem:[%s2 + $0x38] sm:$0xff]
      %v297 = vld [vmem:[%s2 + $0x40] sm:$0xff]
      %v298 = vld [vmem:[%s2 + $0x48] sm:$0xff]
      %v299 = vld [vmem:[%s2 + $0x50] sm:$0xff]
      %v300 = vld [vmem:[%s2 + $0x58] sm:$0xff]
      %v301 = vld [vmem:[%s2 + $0x60] sm:$0xff]
      %v302 = vld [vmem:[%s2 + $0x68] sm:$0xff]
      %v303 = vld [vmem:[%s2 + $0x70] sm:$0xff]
      %v304 = vld [vmem:[%s2 + $0x78] sm:$0xff]
      %305 = vmatprep.subr.mxu0 0.0
      %306 = vmatpush1.msra.mxu0 %v304
      %307 = vmatprep.subr.mxu0 0.0
      %308 = vmatpush1.msra.mxu0 %v303
      %309 = vmatprep.subr.mxu0 0.0
      %310 = vmatpush1.msra.mxu0 %v302
      %311 = vmatprep.subr.mxu0 0.0
      %312 = vmatpush1.msra.mxu0 %v301
      %313 = vmatprep.subr.mxu0 0.0
      %314 = vmatpush1.msra.mxu0 %v300
      %315 = vmatprep.subr.mxu0 0.0
      %316 = vmatpush1.msra.mxu0 %v299
      %317 = vmatprep.subr.mxu0 0.0
      %318 = vmatpush1.msra.mxu0 %v298
      %319 = vmatprep.subr.mxu0 0.0
      %320 = vmatpush1.msra.mxu0 %v297
      %321 = vmatprep.subr.mxu0 0.0
      %322 = vmatpush1.msra.mxu0 %v296
      %323 = vmatprep.subr.mxu0 0.0
      %324 = vmatpush1.msra.mxu0 %v295
      %325 = vmatprep.subr.mxu0 0.0
      %326 = vmatpush1.msra.mxu0 %v294
      %327 = vmatprep.subr.mxu0 0.0
      %328 = vmatpush1.msra.mxu0 %v293
      %329 = vmatprep.subr.mxu0 0.0
      %330 = vmatpush1.msra.mxu0 %v292
      %331 = vmatprep.subr.mxu0 0.0
      %332 = vmatpush1.msra.mxu0 %v291
      %333 = vmatprep.subr.mxu0 0.0
      %334 = vmatpush1.msra.mxu0 %v290
      %335 = vmatprep.subr.mxu0 0.0
      %336 = vmatpush1.msra.mxu0 %v289
      %337 = vmatprep.subr.mxu0 0.0
      %338 = vmatpush2.msra.mxu0 0.0
      %339 = vmatprep.subr.mxu0 0.0
      %340 = vmatpush2.msra.mxu0 0.0
      %341 = vmatprep.subr.mxu0 0.0
      %342 = vmatpush2.msra.mxu0 0.0
      %343 = vmatprep.subr.mxu0 0.0
      %344 = vmatpush2.msra.mxu0 0.0
      %345 = vmatprep.subr.mxu0 0.0
      %346 = vmatpush2.msra.mxu0 0.0
      %347 = vmatprep.subr.mxu0 0.0
      %348 = vmatpush2.msra.mxu0 0.0
      %349 = vmatprep.subr.mxu0 0.0
      %350 = vmatpush2.msra.mxu0 0.0
      %351 = vmatprep.subr.mxu0 0.0
      %352 = vmatpush2.msra.mxu0 0.0
      %353 = vmatprep.subr.mxu0 0.0
      %354 = vmatpush2.msra.mxu0 0.0
      %355 = vmatprep.subr.mxu0 0.0
      %356 = vmatpush2.msra.mxu0 0.0
      %357 = vmatprep.subr.mxu0 0.0
      %358 = vmatpush2.msra.mxu0 0.0
      %359 = vmatprep.subr.mxu0 0.0
      %360 = vmatpush2.msra.mxu0 0.0
      %361 = vmatprep.subr.mxu0 0.0
      %362 = vmatpush2.msra.mxu0 0.0
      %363 = vmatprep.subr.mxu0 0.0
      %364 = vmatpush2.msra.mxu0 0.0
      %365 = vmatprep.subr.mxu0 0.0
      %366 = vmatpush2.msra.mxu0 0.0
      %367 = vmatprep.subr.mxu0 0.0
      %368 = vmatpush2.msra.mxu0 0.0
      %369 = vmatprep.mubr.f32.mxu0 0.0
      %370 = vmatmul.mubr.f32.gmra.mxu0 %v281
      %v371 = vpop.f32.mrf.mxu0
      %v372 = vadd.f32 0.0, %v371
      %v373 = vpop.f32.mrf.mxu0
      %374 = vmatprep.mubr.f32.mxu0 0.0
      %375 = vmatmul.mubr.f32.gmra.mxu0 %v282
      %v376 = vpop.f32.mrf.mxu0
      %v377 = vadd.f32 0.0, %v376
      %v378 = vpop.f32.mrf.mxu0
      %379 = vmatprep.mubr.f32.mxu0 0.0
      %380 = vmatmul.mubr.f32.gmra.mxu0 %v283
      %v381 = vpop.f32.mrf.mxu0
      %v382 = vadd.f32 0.0, %v381
      %v383 = vpop.f32.mrf.mxu0
      %384 = vmatprep.mubr.f32.mxu0 0.0
      %385 = vmatmul.mubr.f32.gmra.mxu0 %v284
      %v386 = vpop.f32.mrf.mxu0
      %v387 = vadd.f32 0.0, %v386
      %v388 = vpop.f32.mrf.mxu0
      %389 = vmatprep.mubr.f32.mxu0 0.0
      %390 = vmatmul.mubr.f32.gmra.mxu0 %v285
      %v391 = vpop.f32.mrf.mxu0
      %v392 = vadd.f32 0.0, %v391
      %v393 = vpop.f32.mrf.mxu0
      %394 = vmatprep.mubr.f32.mxu0 0.0
      %395 = vmatmul.mubr.f32.gmra.mxu0 %v286
      %v396 = vpop.f32.mrf.mxu0
      %v397 = vadd.f32 0.0, %v396
      %v398 = vpop.f32.mrf.mxu0
      %399 = vmatprep.mubr.f32.mxu0 0.0
      %400 = vmatmul.mubr.f32.gmra.mxu0 %v287
      %v401 = vpop.f32.mrf.mxu0
      %v402 = vadd.f32 0.0, %v401
      %v403 = vpop.f32.mrf.mxu0
      %404 = vmatprep.mubr.f32.mxu0 0.0
      %405 = vmatmul.mubr.f32.gmra.mxu0 %v288
      %v406 = vpop.f32.mrf.mxu0
      %v407 = vadd.f32 0.0, %v406
      %v408 = vpop.f32.mrf.mxu0
      %409 = vdwg.mxu0
      %410 = vmatprep.subr.mxu0 0.0
      %411 = vmatpush1.msra.mxu0 %v280
      %412 = vmatprep.subr.mxu0 0.0
      %413 = vmatpush1.msra.mxu0 %v279
      %414 = vmatprep.subr.mxu0 0.0
      %415 = vmatpush1.msra.mxu0 %v278
      %416 = vmatprep.subr.mxu0 0.0
      %417 = vmatpush1.msra.mxu0 %v277
      %418 = vmatprep.subr.mxu0 0.0
      %419 = vmatpush1.msra.mxu0 %v276
      %420 = vmatprep.subr.mxu0 0.0
      %421 = vmatpush1.msra.mxu0 %v275
      %422 = vmatprep.subr.mxu0 0.0
      %423 = vmatpush1.msra.mxu0 %v274
      %424 = vmatprep.subr.mxu0 0.0
      %425 = vmatpush1.msra.mxu0 %v273
      %426 = vmatprep.subr.mxu0 0.0
      %427 = vmatpush1.msra.mxu0 %v272
      %428 = vmatprep.subr.mxu0 0.0
      %429 = vmatpush1.msra.mxu0 %v271
      %430 = vmatprep.subr.mxu0 0.0
      %431 = vmatpush1.msra.mxu0 %v270
      %432 = vmatprep.subr.mxu0 0.0
      %433 = vmatpush1.msra.mxu0 %v269
      %434 = vmatprep.subr.mxu0 0.0
      %435 = vmatpush1.msra.mxu0 %v268
      %436 = vmatprep.subr.mxu0 0.0
      %437 = vmatpush1.msra.mxu0 %v267
      %438 = vmatprep.subr.mxu0 0.0
      %439 = vmatpush1.msra.mxu0 %v266
      %440 = vmatprep.subr.mxu0 0.0
      %441 = vmatpush1.msra.mxu0 %v265
      %442 = vmatprep.subr.mxu0 0.0
      %443 = vmatpush2.msra.mxu0 0.0
      %444 = vmatprep.subr.mxu0 0.0
      %445 = vmatpush2.msra.mxu0 0.0
      %446 = vmatprep.subr.mxu0 0.0
      %447 = vmatpush2.msra.mxu0 0.0
      %448 = vmatprep.subr.mxu0 0.0
      %449 = vmatpush2.msra.mxu0 0.0
      %450 = vmatprep.subr.mxu0 0.0
      %451 = vmatpush2.msra.mxu0 0.0
      %452 = vmatprep.subr.mxu0 0.0
      %453 = vmatpush2.msra.mxu0 0.0
      %454 = vmatprep.subr.mxu0 0.0
      %455 = vmatpush2.msra.mxu0 0.0
      %456 = vmatprep.subr.mxu0 0.0
      %457 = vmatpush2.msra.mxu0 0.0
      %458 = vmatprep.subr.mxu0 0.0
      %459 = vmatpush2.msra.mxu0 0.0
      %460 = vmatprep.subr.mxu0 0.0
      %461 = vmatpush2.msra.mxu0 0.0
      %462 = vmatprep.subr.mxu0 0.0
      %463 = vmatpush2.msra.mxu0 0.0
      %464 = vmatprep.subr.mxu0 0.0
      %465 = vmatpush2.msra.mxu0 0.0
      %466 = vmatprep.subr.mxu0 0.0
      %467 = vmatpush2.msra.mxu0 0.0
      %468 = vmatprep.subr.mxu0 0.0
      %469 = vmatpush2.msra.mxu0 0.0
      %470 = vmatprep.subr.mxu0 0.0
      %471 = vmatpush2.msra.mxu0 0.0
      %472 = vmatprep.subr.mxu0 0.0
      %473 = vmatpush2.msra.mxu0 0.0
      %474 = vmatprep.mubr.f32.mxu0 0.0
      %475 = vmatmul.mubr.f32.gmra.mxu0 %v240
      %v476 = vpop.f32.mrf.mxu0
      %v477 = vadd.f32 %v372, %v476
      %v478 = vpop.f32.mrf.mxu0
      %479 = vmatprep.mubr.f32.mxu0 0.0
      %480 = vmatmul.mubr.f32.gmra.mxu0 %v241
      %v481 = vpop.f32.mrf.mxu0
      %v482 = vadd.f32 %v377, %v481
      %v483 = vpop.f32.mrf.mxu0
      %484 = vmatprep.mubr.f32.mxu0 0.0
      %485 = vmatmul.mubr.f32.gmra.mxu0 %v242
      %v486 = vpop.f32.mrf.mxu0
      %v487 = vadd.f32 %v382, %v486
      %v488 = vpop.f32.mrf.mxu0
      %489 = vmatprep.mubr.f32.mxu0 0.0
      %490 = vmatmul.mubr.f32.gmra.mxu0 %v243
      %v491 = vpop.f32.mrf.mxu0
      %v492 = vadd.f32 %v387, %v491
      %v493 = vpop.f32.mrf.mxu0
      %494 = vmatprep.mubr.f32.mxu0 0.0
      %495 = vmatmul.mubr.f32.gmra.mxu0 %v244
      %v496 = vpop.f32.mrf.mxu0
      %v497 = vadd.f32 %v392, %v496
      %v498 = vpop.f32.mrf.mxu0
      %499 = vmatprep.mubr.f32.mxu0 0.0
      %500 = vmatmul.mubr.f32.gmra.mxu0 %v245
      %v501 = vpop.f32.mrf.mxu0
      %v502 = vadd.f32 %v397, %v501
      %v503 = vpop.f32.mrf.mxu0
      %504 = vmatprep.mubr.f32.mxu0 0.0
      %505 = vmatmul.mubr.f32.gmra.mxu0 %v246
      %v506 = vpop.f32.mrf.mxu0
      %v507 = vadd.f32 %v402, %v506
      %v508 = vpop.f32.mrf.mxu0
      %509 = vmatprep.mubr.f32.mxu0 0.0
      %510 = vmatmul.mubr.f32.gmra.mxu0 %v247
      %v511 = vpop.f32.mrf.mxu0
      %v512 = vadd.f32 %v407, %v511
      %v513 = vpop.f32.mrf.mxu0
      %514 = vdwg.mxu0
      %v515 = vld [vmem:[#allocation2 + $0x2] sm:$0xff]
      %v516 = vld [vmem:[#allocation2 + $0xa] sm:$0xff]
      %v517 = vld [vmem:[#allocation2 + $0x1a] sm:$0xff]
      %v518 = vld [vmem:[#allocation2 + $0x22] sm:$0xff]
      %v519 = vld [vmem:[#allocation2 + $0x32] sm:$0xff]
      %v520 = vld [vmem:[#allocation2 + $0x3a] sm:$0xff]
      %v521 = vld [vmem:[#allocation2 + $0x4a] sm:$0xff]
      %v522 = vld [vmem:[#allocation2 + $0x52] sm:$0xff]
      %s523 = scalar_lea.vmem %s2, 256
      %v524 = vld [vmem:[%s523] sm:$0xff]
      %v525 = vld [vmem:[%s523 + $0x8] sm:$0xff]
      %v526 = vld [vmem:[%s523 + $0x10] sm:$0xff]
      %v527 = vld [vmem:[%s523 + $0x18] sm:$0xff]
      %v528 = vld [vmem:[%s523 + $0x20] sm:$0xff]
      %v529 = vld [vmem:[%s523 + $0x28] sm:$0xff]
      %v530 = vld [vmem:[%s523 + $0x30] sm:$0xff]
      %v531 = vld [vmem:[%s523 + $0x38] sm:$0xff]
      %v532 = vld [vmem:[%s523 + $0x40] sm:$0xff]
      %v533 = vld [vmem:[%s523 + $0x48] sm:$0xff]
      %v534 = vld [vmem:[%s523 + $0x50] sm:$0xff]
      %v535 = vld [vmem:[%s523 + $0x58] sm:$0xff]
      %v536 = vld [vmem:[%s523 + $0x60] sm:$0xff]
      %v537 = vld [vmem:[%s523 + $0x68] sm:$0xff]
      %v538 = vld [vmem:[%s523 + $0x70] sm:$0xff]
      %v539 = vld [vmem:[%s523 + $0x78] sm:$0xff]
      %540 = vmatprep.subr.mxu0 0.0
      %541 = vmatpush1.msra.mxu0 %v539
      %542 = vmatprep.subr.mxu0 0.0
      %543 = vmatpush1.msra.mxu0 %v538
      %544 = vmatprep.subr.mxu0 0.0
      %545 = vmatpush1.msra.mxu0 %v537
      %546 = vmatprep.subr.mxu0 0.0
      %547 = vmatpush1.msra.mxu0 %v536
      %548 = vmatprep.subr.mxu0 0.0
      %549 = vmatpush1.msra.mxu0 %v535
      %550 = vmatprep.subr.mxu0 0.0
      %551 = vmatpush1.msra.mxu0 %v534
      %552 = vmatprep.subr.mxu0 0.0
      %553 = vmatpush1.msra.mxu0 %v533
      %554 = vmatprep.subr.mxu0 0.0
      %555 = vmatpush1.msra.mxu0 %v532
      %556 = vmatprep.subr.mxu0 0.0
      %557 = vmatpush1.msra.mxu0 %v531
      %558 = vmatprep.subr.mxu0 0.0
      %559 = vmatpush1.msra.mxu0 %v530
      %560 = vmatprep.subr.mxu0 0.0
      %561 = vmatpush1.msra.mxu0 %v529
      %562 = vmatprep.subr.mxu0 0.0
      %563 = vmatpush1.msra.mxu0 %v528
      %564 = vmatprep.subr.mxu0 0.0
      %565 = vmatpush1.msra.mxu0 %v527
      %566 = vmatprep.subr.mxu0 0.0
      %567 = vmatpush1.msra.mxu0 %v526
      %568 = vmatprep.subr.mxu0 0.0
      %569 = vmatpush1.msra.mxu0 %v525
      %570 = vmatprep.subr.mxu0 0.0
      %571 = vmatpush1.msra.mxu0 %v524
      %572 = vmatprep.subr.mxu0 0.0
      %573 = vmatpush2.msra.mxu0 0.0
      %574 = vmatprep.subr.mxu0 0.0
      %575 = vmatpush2.msra.mxu0 0.0
      %576 = vmatprep.subr.mxu0 0.0
      %577 = vmatpush2.msra.mxu0 0.0
      %578 = vmatprep.subr.mxu0 0.0
      %579 = vmatpush2.msra.mxu0 0.0
      %580 = vmatprep.subr.mxu0 0.0
      %581 = vmatpush2.msra.mxu0 0.0
      %582 = vmatprep.subr.mxu0 0.0
      %583 = vmatpush2.msra.mxu0 0.0
      %584 = vmatprep.subr.mxu0 0.0
      %585 = vmatpush2.msra.mxu0 0.0
      %586 = vmatprep.subr.mxu0 0.0
      %587 = vmatpush2.msra.mxu0 0.0
      %588 = vmatprep.subr.mxu0 0.0
      %589 = vmatpush2.msra.mxu0 0.0
      %590 = vmatprep.subr.mxu0 0.0
      %591 = vmatpush2.msra.mxu0 0.0
      %592 = vmatprep.subr.mxu0 0.0
      %593 = vmatpush2.msra.mxu0 0.0
      %594 = vmatprep.subr.mxu0 0.0
      %595 = vmatpush2.msra.mxu0 0.0
      %596 = vmatprep.subr.mxu0 0.0
      %597 = vmatpush2.msra.mxu0 0.0
      %598 = vmatprep.subr.mxu0 0.0
      %599 = vmatpush2.msra.mxu0 0.0
      %600 = vmatprep.subr.mxu0 0.0
      %601 = vmatpush2.msra.mxu0 0.0
      %602 = vmatprep.subr.mxu0 0.0
      %603 = vmatpush2.msra.mxu0 0.0
      %604 = vmatprep.mubr.f32.mxu0 0.0
      %605 = vmatmul.mubr.f32.gmra.mxu0 %v515
      %v606 = vpop.f32.mrf.mxu0
      %v607 = vadd.f32 0.0, %v606
      %v608 = vpop.f32.mrf.mxu0
      %609 = vmatprep.mubr.f32.mxu0 0.0
      %610 = vmatmul.mubr.f32.gmra.mxu0 %v516
      %v611 = vpop.f32.mrf.mxu0
      %v612 = vadd.f32 0.0, %v611
      %v613 = vpop.f32.mrf.mxu0
      %614 = vmatprep.mubr.f32.mxu0 0.0
      %615 = vmatmul.mubr.f32.gmra.mxu0 %v517
      %v616 = vpop.f32.mrf.mxu0
      %v617 = vadd.f32 0.0, %v616
      %v618 = vpop.f32.mrf.mxu0
      %619 = vmatprep.mubr.f32.mxu0 0.0
      %620 = vmatmul.mubr.f32.gmra.mxu0 %v518
      %v621 = vpop.f32.mrf.mxu0
      %v622 = vadd.f32 0.0, %v621
      %v623 = vpop.f32.mrf.mxu0
      %624 = vmatprep.mubr.f32.mxu0 0.0
      %625 = vmatmul.mubr.f32.gmra.mxu0 %v519
      %v626 = vpop.f32.mrf.mxu0
      %v627 = vadd.f32 0.0, %v626
      %v628 = vpop.f32.mrf.mxu0
      %629 = vmatprep.mubr.f32.mxu0 0.0
      %630 = vmatmul.mubr.f32.gmra.mxu0 %v520
      %v631 = vpop.f32.mrf.mxu0
      %v632 = vadd.f32 0.0, %v631
      %v633 = vpop.f32.mrf.mxu0
      %634 = vmatprep.mubr.f32.mxu0 0.0
      %635 = vmatmul.mubr.f32.gmra.mxu0 %v521
      %v636 = vpop.f32.mrf.mxu0
      %v637 = vadd.f32 0.0, %v636
      %v638 = vpop.f32.mrf.mxu0
      %639 = vmatprep.mubr.f32.mxu0 0.0
      %640 = vmatmul.mubr.f32.gmra.mxu0 %v522
      %v641 = vpop.f32.mrf.mxu0
      %v642 = vadd.f32 0.0, %v641
      %v643 = vpop.f32.mrf.mxu0
      %644 = vdwg.mxu0
      %v645 = vadd.f32 %v477, %v607
      %v646 = vadd.f32 %v482, %v612
      %v647 = vadd.f32 %v487, %v617
      %v648 = vadd.f32 %v492, %v622
      %v649 = vadd.f32 %v497, %v627
      %v650 = vadd.f32 %v502, %v632
      %v651 = vadd.f32 %v507, %v637
      %v652 = vadd.f32 %v512, %v642
      %653 = vst [vmem:[%s211] sm:$0xff] %v645
      %654 = vst [vmem:[%s211 + $0x8] sm:$0xff] %v646
      %655 = vst [vmem:[%s211 + $0x10] sm:$0xff] %v647
      %656 = vst [vmem:[%s211 + $0x18] sm:$0xff] %v648
      %657 = vst [vmem:[%s211 + $0x20] sm:$0xff] %v649
      %658 = vst [vmem:[%s211 + $0x28] sm:$0xff] %v650
      %659 = vst [vmem:[%s211 + $0x30] sm:$0xff] %v651
      %660 = vst [vmem:[%s211 + $0x38] sm:$0xff] %v652
      %v661 = vadd.f32 %v645, %v646
      %v662 = vadd.f32 %v661, %v647
      %v663 = vadd.f32 %v662, %v648
      %v664 = vadd.f32 %v663, %v649
      %v665 = vadd.f32 %v664, %v650
      %v666 = vadd.f32 %v665, %v651
      %v667 = vadd.f32 %v666, %v652
      %v668 = vrot.slane %v667, 4
      %v669 = vadd.f32 %v667, %v668
      %v670 = vrot.slane %v669, 2
      %v671 = vadd.f32 %v669, %v670
      %v672 = vrot.slane %v671, 1
      %v673 = vadd.f32 %v671, %v672
      %v674 = vmul.f32 %v645, %v645
      %v675 = vmul.f32 %v646, %v646
      %v676 = vmul.f32 %v647, %v647
      %v677 = vmul.f32 %v648, %v648
      %v678 = vmul.f32 %v649, %v649
      %v679 = vmul.f32 %v650, %v650
      %v680 = vmul.f32 %v651, %v651
      %v681 = vmul.f32 %v652, %v652
      %v682 = vadd.f32 %v674, %v675
      %v683 = vadd.f32 %v682, %v676
      %v684 = vadd.f32 %v683, %v677
      %v685 = vadd.f32 %v684, %v678
      %v686 = vadd.f32 %v685, %v679
      %v687 = vadd.f32 %v686, %v680
      %v688 = vadd.f32 %v687, %v681
      %v689 = vrot.slane %v688, 4
      %v690 = vadd.f32 %v688, %v689
      %v691 = vrot.slane %v690, 2
      %v692 = vadd.f32 %v690, %v691
      %v693 = vrot.slane %v692, 1
      %v694 = vadd.f32 %v692, %v693
      %vm695 = vcmask 1040384
      %v696 = vsel %vm695, %v673, %v694
      %697 = vst [vmem:[%s216] sm:$0x3] %v696
      %s698 = smul.u32 4, %s16
      %p699 = scmp.lt.s32.totalorder %s698, 7
      %s700 = scalar_select %p699, %s698, 7
      %s701 = smul.addr %s700, 2
      %s702 = smul.addr %s701, 8
      %s703 = scalar_lea.vmem %s3, %s702
      %p704 = scmp.lt.s32.totalorder %s16, 1
      %s705 = scalar_select %p704, %s16, 1
      %s706 = smul.addr %s705, 2
      %s707 = scalar_lea.vmem %s4, %s706
      // Predicated region
      $region33: #{double_conv.3} parent=31 // pred_check
        %p708 = pneg %p102
      $region34: #{double_conv.3} parent=31 // pred_check_branch
        %710 = sbr.rel (%p708) target = $region36
      $region35: #{double_conv.3} parent=31 // pred_region
        %s711 = smul.u32 4, %s16
      $region36: #{double_conv.3} parent=31 // pred_fallthru
        _
      // Predicated region
      $region37: #{double_conv.3} parent=31 // pred_check
        %p712 = pneg %p128
      $region38: #{double_conv.3} parent=31 // pred_check_branch
        %714 = sbr.rel (%p712) target = $region40
      $region39: #{double_conv.3} parent=31 // pred_region
        _
      $region40: #{double_conv.3} parent=31 // pred_fallthru
        _
    $region32: #{double_conv.3} parent=5 // pred_fallthru
      _
    %p715 = scmp.le.s32.totalorder 2, %s11
    // Predicated region
    $region41: #{double_conv.3} parent=5 // pred_check
      %p716 = pneg %p715
    $region42: #{double_conv.3} parent=5 // pred_check_branch
      %718 = sbr.rel (%p716) target = $region44
    $region43: #{double_conv.3} parent=5 // pred_region
      %s719 = ssub.s32 %s11, 2
      // Predicated region
      $region45: #{double_conv.3} parent=43 // pred_check
        %p720 = pneg %p108
      $region46: #{double_conv.3} parent=43 // pred_check_branch
        %722 = sbr.rel (%p720) target = $region48
      $region47: #{double_conv.3} parent=43 // pred_region
        %s723 = smul.u32 4, %s17
        %p724 = scmp.lt.s32.totalorder %s723, 7
        %s725 = scalar_select %p724, %s723, 7
        %s726 = smul.addr %s725, 2
        %s727 = smul.addr %s726, 8
        %s728 = scalar_lea.vmem %s3, %s727
      $region48: #{double_conv.3} parent=43 // pred_fallthru
        _
      // Predicated region
      $region49: #{double_conv.3} parent=43 // pred_check
        %p729 = pneg %p134
      $region50: #{double_conv.3} parent=43 // pred_check_branch
        %731 = sbr.rel (%p729) target = $region52
      $region51: #{double_conv.3} parent=43 // pred_region
        %p732 = scmp.lt.s32.totalorder %s17, 1
        %s733 = scalar_select %p732, %s17, 1
        %s734 = smul.addr %s733, 2
        %s735 = scalar_lea.vmem %s4, %s734
      $region52: #{double_conv.3} parent=43 // pred_fallthru
        _
    $region44: #{double_conv.3} parent=5 // pred_fallthru
      _
  $region6: #{double_conv.3} parent=0 // loop_footer
    %s15 = sadd.s32 1, %s11
  $region7: #{double_conv.3} parent=0 // loop_footer_branch
    %10 = sbr.rel target = $region3
  $region8: #{double_conv.3} parent=0 // loop_exit
    _

</llo_original>
